<compile_context>
chip_gen: v5e
topology: v5e:2x2
jax: 0.10.0
libtpu: 0.0.40
codegen_flags: <defaults>
</compile_context>

<pallas_src>
import functools

import jax
import jax.numpy as jnp
from jax.experimental import pallas as pl
from jax.experimental.pallas import tpu as pltpu

_LANE = 128


def _round_up(x, m):
    return (x + m - 1) // m * m


@functools.lru_cache(maxsize=None)
def _vmem_limit_bytes():
    """Scoped-VMEM cap derived from the actual chip (conservative fallback)."""
    phys = None
    try:
        phys = int(getattr(pltpu.get_tpu_info(), "vmem_capacity_bytes", 0)) or None
    except Exception:
        phys = None
    if phys is None:
        phys = 64 * 1024 * 1024  # assume the smallest (v7x) if we cannot query
    return min((phys * 3) // 4, 100 * 1024 * 1024)


# ---------------------------------------------------------------------------
# Fused Pallas kernel: conv1(x9 taps) -> mask -> conv2 -> head -> postprocess
# ---------------------------------------------------------------------------
def _fused_detect_kernel(pT_ref, coord_ref, w1_ref, b1_ref, w2_ref, b2_ref,
                         w3_ref, b3_ref, boxes_ref, scores_ref, idx_ref, *,
                         num_classes, h1_dim, w1_dim, c1):
    """All operands are transposed ("M in lanes"):

      pT_ref    : [147, TM]   bf16  7x7 / stride-4 image patches
      coord_ref : [2, TM]     int32 (i2, j2) spatial coords of each prediction
      w1_ref    : [9*c1, 147] bf16  conv1 weights expanded to the 9 conv2 taps
      w2_ref    : [c2, 9*c1]  bf16
      w3_ref    : [K, c2]     bf16  (K = 4 + num_classes)
      b*_ref    : [rows, 1]   f32
    Outputs (lane-dense over M): boxes [4, TM], scores [1, TM], idx [1, TM].
    """
    # conv1 evaluated at the 3x3 grid of conv2 tap positions: [9*c1, TM]
    h1 = jnp.dot(w1_ref[...], pT_ref[...], preferred_element_type=jnp.float32)
    h1 = h1 + b1_ref[...]
    h1 = h1 * jax.nn.sigmoid(h1)            # SiLU (f32, rides on EUP/VPU slots)

    # Reproduce conv2's zero padding of the conv1 feature map: any tap whose
    # (i1, j1) position falls outside [0, H1) x [0, W1) must contribute 0.
    r = jax.lax.broadcasted_iota(jnp.int32, h1.shape, 0)     # hidden row id
    t3 = 3 * c1
    di = (r >= t3).astype(jnp.int32) + (r >= 2 * t3).astype(jnp.int32)   # tap row
    rm = r - t3 * di
    dj = (rm >= c1).astype(jnp.int32) + (rm >= 2 * c1).astype(jnp.int32)  # tap col
    i1 = 2 * coord_ref[0:1, :] + di - 1
    j1 = 2 * coord_ref[1:2, :] + dj - 1
    valid = (i1 >= 0) & (i1 < h1_dim) & (j1 >= 0) & (j1 < w1_dim)
    h1 = jnp.where(valid, h1, 0.0)

    # conv2 (3x3 expressed as one dense matmul over the 9 taps) + SiLU: [c2, TM]
    h2 = jnp.dot(w2_ref[...], h1.astype(w2_ref.dtype),
                 preferred_element_type=jnp.float32)
    h2 = h2 + b2_ref[...]
    h2 = h2 * jax.nn.sigmoid(h2)

    # 1x1 detection head: [K, TM] = [4 box rows : num_classes class rows]
    y = jnp.dot(w3_ref[...], h2.astype(w3_ref.dtype),
                preferred_element_type=jnp.float32)
    y = y + b3_ref[...]

    # --- yolov8_detect_postprocess (all lane-dense over M) ---
    xy = y[0:2, :]
    half = y[2:4, :] * 0.5
    boxes_ref[...] = jnp.concatenate([xy - half, xy + half], axis=0)  # x1,y1,x2,y2

    row = jax.lax.broadcasted_iota(jnp.int32, y.shape, 0)
    is_cls = (row >= 4) & (row < 4 + num_classes)
    cls = jnp.where(is_cls, y, jnp.float32(-1e30))    # f32 epilogue: sentinel finite
    mx = jnp.max(cls, axis=0, keepdims=True)
    scores_ref[...] = mx
    # first max index on ties (matches jnp.argmax / the reference; torch.max
    # tie-breaking is not formally guaranteed cross-backend, so we document it).
    cand = jnp.where(cls == mx, (row - 4).astype(jnp.float32), jnp.float32(1e9))
    idx_ref[...] = jnp.min(cand, axis=0, keepdims=True).astype(jnp.int32)


# ---------------------------------------------------------------------------
# Pallas wrapper (1-D "parallel" grid over M, lane-dense blocks everywhere)
# ---------------------------------------------------------------------------
def _pick_tile_m(m, tm_req):
    m_ceil = _round_up(m, _LANE)
    if m_ceil < 2 * _LANE:
        return m_ceil                              # toy sizes: single tile
    half = (m_ceil // 2) // _LANE * _LANE          # guarantee >=2 tiles (v7x 2-TC)
    return max(_LANE, min(tm_req, half))


def _fused_detect(pT, coords, w1x, b1x, w2t, b2, w3t, b3, *,
                  num_classes, h1_dim, w1_dim, c1, tile_m):
    K1, M = pT.shape
    nh = w1x.shape[0]
    c2 = w2t.shape[0]
    K = w3t.shape[0]
    tm = _pick_tile_m(M, tile_m)
    m_pad = _round_up(M, tm)
    if m_pad != M:
        pT = jnp.pad(pT, ((0, 0), (0, m_pad - M)))
        coords = jnp.pad(coords, ((0, 0), (0, m_pad - M)))

    elt = jnp.dtype(pT.dtype).itemsize
    cost = pl.CostEstimate(
        flops=2 * m_pad * (K1 * nh + nh * c2 + c2 * K),
        transcendentals=m_pad * (nh + c2),
        bytes_accessed=m_pad * (K1 * elt + 2 * 4 + 6 * 4)
        + (K1 * nh + nh * c2 + c2 * K) * elt + (nh + c2 + K) * 4,
    )
    kern = functools.partial(_fused_detect_kernel, num_classes=num_classes,
                             h1_dim=h1_dim, w1_dim=w1_dim, c1=c1)

    boxes, scores, idx = pl.pallas_call(
        kern,
        out_shape=(
            jax.ShapeDtypeStruct((4, m_pad), jnp.float32),
            jax.ShapeDtypeStruct((1, m_pad), jnp.float32),
            jax.ShapeDtypeStruct((1, m_pad), jnp.int32),
        ),
        grid=(m_pad // tm,),
        in_specs=[
            pl.BlockSpec((K1, tm), lambda i: (0, i)),   # patches: per-step DMA
            pl.BlockSpec((2, tm), lambda i: (0, i)),    # coords
            pl.BlockSpec((nh, K1), lambda i: (0, 0)),   # weights/biases: resident
            pl.BlockSpec((nh, 1), lambda i: (0, 0)),
            pl.BlockSpec((c2, nh), lambda i: (0, 0)),
            pl.BlockSpec((c2, 1), lambda i: (0, 0)),
            pl.BlockSpec((K, c2), lambda i: (0, 0)),
            pl.BlockSpec((K, 1), lambda i: (0, 0)),
        ],
        out_specs=(
            pl.BlockSpec((4, tm), lambda i: (0, i)),
            pl.BlockSpec((1, tm), lambda i: (0, i)),
            pl.BlockSpec((1, tm), lambda i: (0, i)),
        ),
        compiler_params=pltpu.CompilerParams(
            dimension_semantics=("parallel",),
            vmem_limit_bytes=_vmem_limit_bytes(),
        ),
        cost_estimate=cost,
    )(pT, coords, w1x, b1x, w2t, b2, w3t, b3)

    if m_pad != M:
        boxes, scores, idx = boxes[:, :M], scores[:, :M], idx[:, :M]
    return boxes, scores, idx


# ---------------------------------------------------------------------------
# Glue: single 7x7 / stride-4 im2col (NCHW, already transposed) + weight expand
# ---------------------------------------------------------------------------
def _im2col7_nchw_T(x_nchw):
    """[B, 3, H, W] -> patches [7*7*3, B*Ho*Wo] for a 7x7 / stride-4 / pad-3 window.

    Row order is (di, dj, c) with c fastest; column order is (b, i2, j2).
    """
    B, C, H, W = x_nchw.shape
    x = jnp.pad(x_nchw, ((0, 0), (0, 0), (3, 3), (3, 3)))
    Ho = (H + 6 - 7) // 4 + 1
    Wo = (W + 6 - 7) // 4 + 1
    cols = []
    for di in range(7):
        for dj in range(7):
            cols.append(x[:, :, di:di + 4 * Ho:4, dj:dj + 4 * Wo:4])  # [B, C, Ho, Wo]
    p = jnp.stack(cols, axis=0)                  # [49, B, C, Ho, Wo]
    p = jnp.transpose(p, (0, 2, 1, 3, 4))        # [49, C, B, Ho, Wo]
    return p.reshape(49 * C, B * Ho * Wo), Ho, Wo


def _expand_conv1_weights(w1, c1):
    """conv1 weights [27, c1] (rows: ki,kj,c; c fastest) -> [147, 9*c1].

    Column block p = dip*3+djp evaluates conv1 at the conv2 tap (dip, djp);
    its 27 non-zero rows are the 7x7-patch entries at (2*dip+ki, 2*djp+kj, c).
    """
    blocks = []
    for dip in range(3):
        for djp in range(3):
            dst = [((2 * dip + ki) * 7 + (2 * djp + kj)) * 3 + c
                   for ki in range(3) for kj in range(3) for c in range(3)]
            blocks.append(
                jnp.zeros((7 * 7 * 3, c1), w1.dtype).at[jnp.array(dst), :].set(w1))
    return jnp.concatenate(blocks, axis=1)       # [147, 9*c1]


def init_params(key, num_classes=8, c1=8, c2=16):
    k1, k2, k3, k4, k5, k6 = jax.random.split(key, 6)
    K = 4 + num_classes
    return {
        "w1": 0.1 * jax.random.normal(k1, (3 * 3 * 3, c1), jnp.float32),
        "b1": 0.1 * jax.random.normal(k2, (c1,), jnp.float32),
        "w2": 0.1 * jax.random.normal(k3, (c1 * 3 * 3, c2), jnp.float32),
        "b2": 0.1 * jax.random.normal(k4, (c2,), jnp.float32),
        "w3": 0.1 * jax.random.normal(k5, (c2, K), jnp.float32),
        "b3": 0.1 * jax.random.normal(k6, (K,), jnp.float32),
    }


def yolov8_detector_forward(image_nchw, params, *, compute_dtype=jnp.bfloat16,
                            tile_m=4096):
    """Mirrors YoloV8Detector.forward: backbone -> head -> yolov8_detect_postprocess.

    Returns boxes [B, P, 4] (x1,y1,x2,y2), scores [B, P], class_idx [B, P] int32.
    """
    B, _, H, W = image_nchw.shape
    c1 = params["w1"].shape[1]
    c2 = params["w2"].shape[1]
    K = params["w3"].shape[1]
    num_classes = K - 4

    # One 7x7 / stride-4 im2col straight from NCHW (no NHWC round trip), already
    # transposed to [147, M] so every Pallas block is lane-dense over M.
    pT, H2, W2 = _im2col7_nchw_T(image_nchw.astype(compute_dtype))
    M = B * H2 * W2
    H1 = (H - 1) // 2 + 1
    W1 = (W - 1) // 2 + 1

    # (i2, j2) per prediction, used in-kernel to rebuild conv2's zero padding.
    ii = jax.lax.broadcasted_iota(jnp.int32, (B, H2, W2), 1).reshape(1, M)
    jj = jax.lax.broadcasted_iota(jnp.int32, (B, H2, W2), 2).reshape(1, M)
    coords = jnp.concatenate([ii, jj], axis=0)

    # Pre-transposed weights (setup-time, tiny): conv1 expanded to the 9 taps.
    w1x = _expand_conv1_weights(params["w1"], c1).T.astype(compute_dtype)  # [9c1,147]
    b1x = jnp.tile(params["b1"], 9).reshape(9 * c1, 1).astype(jnp.float32)
    w2t = params["w2"].T.astype(compute_dtype)                             # [c2, 9c1]
    b2 = params["b2"].reshape(c2, 1).astype(jnp.float32)
    w3t = params["w3"].T.astype(compute_dtype)                             # [K, c2]
    b3 = params["b3"].reshape(K, 1).astype(jnp.float32)

    boxes_t, scores_t, idx_t = _fused_detect(
        pT, coords, w1x, b1x, w2t, b2, w3t, b3,
        num_classes=num_classes, h1_dim=H1, w1_dim=W1, c1=c1, tile_m=tile_m)

    P = H2 * W2
    boxes = boxes_t.T.reshape(B, P, 4)   # cheap XLA transpose of a tiny slab
    scores = scores_t.reshape(B, P)
    class_idx = idx_t.reshape(B, P)
    return boxes, scores, class_idx


# ---------------------------------------------------------------------------
# Pure-JAX reference (same bf16 casts, for verification only)
# ---------------------------------------------------------------------------
def _im2col_nhwc(x, k, stride, pad):
    x = jnp.pad(x, ((0, 0), (pad, pad), (pad, pad), (0, 0)))
    B, H, W, C = x.shape
    Ho = (H - k) // stride + 1
    Wo = (W - k) // stride + 1
    cols = []
    for di in range(k):
        for dj in range(k):
            cols.append(x[:, di:di + stride * Ho:stride, dj:dj + stride * Wo:stride, :])
    p = jnp.stack(cols, axis=3)          # [B, Ho, Wo, k*k, C]
    return p.reshape(B, Ho, Wo, k * k * C), Ho, Wo


def _reference_forward(image_nchw, params, compute_dtype=jnp.bfloat16):
    B = image_nchw.shape[0]
    x = jnp.transpose(image_nchw, (0, 2, 3, 1))

    p1, H1, W1 = _im2col_nhwc(x, 3, 2, 1)
    a1 = p1.reshape(-1, p1.shape[-1]).astype(compute_dtype)
    y1 = jnp.dot(a1, params["w1"].astype(compute_dtype),
                 preferred_element_type=jnp.float32) + params["b1"]
    y1 = y1 * jax.nn.sigmoid(y1)
    x1 = y1.astype(compute_dtype).reshape(B, H1, W1, -1)

    p2, H2, W2 = _im2col_nhwc(x1, 3, 2, 1)
    h = jnp.dot(p2.reshape(-1, p2.shape[-1]), params["w2"].astype(compute_dtype),
                preferred_element_type=jnp.float32) + params["b2"]
    h = h * jax.nn.sigmoid(h)
    y3 = jnp.dot(h.astype(compute_dtype), params["w3"].astype(compute_dtype),
                 preferred_element_type=jnp.float32) + params["b3"]

    K = params["w3"].shape[1]
    det = y3.reshape(B, H2 * W2, K)          # == permute([0,2,1]) of [B, K, P]
    xy, wh = det[..., :2], det[..., 2:4]
    boxes = jnp.concatenate([xy - wh * 0.5, xy + wh * 0.5], axis=-1)
    cls = det[..., 4:]
    return boxes, jnp.max(cls, axis=-1), jnp.argmax(cls, axis=-1).astype(jnp.int32)


# ---------------------------------------------------------------------------
if __name__ == "__main__":
    key = jax.random.PRNGKey(0)
    k_img, k_par = jax.random.split(key)

    # Small-but-nontrivial input (batch 2, 3x64x64): M = 2*16*16 = 512 predictions,
    # so the auto tile cap yields a 2-tile grid (exercises the double-buffered DMA
    # pipeline and the v7x 2-TensorCore "parallel" split) while staying tiny.
    image = jax.random.uniform(k_img, (2, 3, 64, 64), dtype=jnp.float32)
    params = init_params(k_par, num_classes=8)

    fwd = jax.jit(yolov8_detector_forward)
    boxes, scores, class_idx = jax.block_until_ready(fwd(image, params))

    ref_boxes, ref_scores, ref_idx = _reference_forward(image, params)

    P = 16 * 16
    assert boxes.shape == (2, P, 4) and scores.shape == (2, P) and class_idx.shape == (2, P)
    assert boxes.dtype == jnp.float32 and scores.dtype == jnp.float32 and class_idx.dtype == jnp.int32
    assert jnp.allclose(boxes, ref_boxes, rtol=5e-3, atol=5e-3)
    assert jnp.allclose(scores, ref_scores, rtol=5e-3, atol=5e-3)
    assert jnp.array_equal(class_idx, ref_idx)

    print("KERNEL_OK")
</pallas_src>

<mosaic_0001>
module attributes {stable_mosaic.version = 11 : i64} {
  func.func @_fused_detect_kernel(%arg0: i32, %arg1: memref<147x256xbf16, #tpu.memory_space<vmem>>, %arg2: memref<2x256xi32, #tpu.memory_space<vmem>>, %arg3: memref<72x147xbf16, #tpu.memory_space<vmem>>, %arg4: memref<72x1xf32, #tpu.memory_space<vmem>>, %arg5: memref<16x72xbf16, #tpu.memory_space<vmem>>, %arg6: memref<16x1xf32, #tpu.memory_space<vmem>>, %arg7: memref<12x16xbf16, #tpu.memory_space<vmem>>, %arg8: memref<12x1xf32, #tpu.memory_space<vmem>>, %arg9: memref<4x256xf32, #tpu.memory_space<vmem>>, %arg10: memref<1x256xf32, #tpu.memory_space<vmem>>, %arg11: memref<1x256xi32, #tpu.memory_space<vmem>>) attributes {dimension_semantics = [#tpu.dimension_semantics<parallel>], iteration_bounds = array<i64: 2>, scalar_prefetch = 0 : i64, scratch_operands = 0 : i64, tpu.core_type = #tpu.core_type<tc>, window_params = [{transform_indices = @transform_0, window_bounds = array<i64: 147, 256>}, {transform_indices = @transform_1, window_bounds = array<i64: 2, 256>}, {pipeline_mode = #tpu.pipeline_mode<synchronous>, transform_indices = @transform_2, window_bounds = array<i64: 72, 147>}, {pipeline_mode = #tpu.pipeline_mode<synchronous>, transform_indices = @transform_3, window_bounds = array<i64: 72, 1>}, {pipeline_mode = #tpu.pipeline_mode<synchronous>, transform_indices = @transform_4, window_bounds = array<i64: 16, 72>}, {pipeline_mode = #tpu.pipeline_mode<synchronous>, transform_indices = @transform_5, window_bounds = array<i64: 16, 1>}, {pipeline_mode = #tpu.pipeline_mode<synchronous>, transform_indices = @transform_6, window_bounds = array<i64: 12, 16>}, {pipeline_mode = #tpu.pipeline_mode<synchronous>, transform_indices = @transform_7, window_bounds = array<i64: 12, 1>}, {transform_indices = @transform_8, window_bounds = array<i64: 4, 256>}, {transform_indices = @transform_9, window_bounds = array<i64: 1, 256>}, {transform_indices = @transform_10, window_bounds = array<i64: 1, 256>}]} {
    %c0 = arith.constant 0 : index
    %c0_0 = arith.constant 0 : index
    %0 = vector.load %arg3[%c0, %c0_0] : memref<72x147xbf16, #tpu.memory_space<vmem>>, vector<72x147xbf16>
    %c0_1 = arith.constant 0 : index
    %c0_2 = arith.constant 0 : index
    %1 = vector.load %arg1[%c0_1, %c0_2] : memref<147x256xbf16, #tpu.memory_space<vmem>>, vector<147x256xbf16>
    %cst = arith.constant dense<0.000000e+00> : vector<72x256xf32>
    %2 = tpu.matmul %0, %1, %cst {dimension_numbers = #tpu.dot_dimension_numbers<[1], [0], [0], [1], [0, 0, 1, 1], [], []>} : vector<72x147xbf16>, vector<147x256xbf16>, vector<72x256xf32> -> vector<72x256xf32>
    %c0_3 = arith.constant 0 : index
    %c0_4 = arith.constant 0 : index
    %3 = vector.load %arg4[%c0_3, %c0_4] : memref<72x1xf32, #tpu.memory_space<vmem>>, vector<72x1xf32>
    %4 = vector.broadcast %3 : vector<72x1xf32> to vector<72x256xf32>
    %5 = arith.addf %2, %4 : vector<72x256xf32>
    %6 = arith.negf %5 : vector<72x256xf32>
    %7 = math.exp %6 : vector<72x256xf32>
    %cst_5 = arith.constant 1.000000e+00 : f32
    %8 = vector.broadcast %cst_5 : f32 to vector<72x256xf32>
    %9 = arith.addf %8, %7 : vector<72x256xf32>
    %10 = arith.divf %8, %9 : vector<72x256xf32>
    %11 = arith.mulf %5, %10 : vector<72x256xf32>
    %12 = tpu.iota {dimensions = array<i32: 0>} : vector<72x256xi32>
    %c24_i32 = arith.constant 24 : i32
    %13 = vector.broadcast %c24_i32 : i32 to vector<72x256xi32>
    %14 = arith.cmpi sge, %12, %13 : vector<72x256xi32>
    %15 = arith.extui %14 : vector<72x256xi1> to vector<72x256xi32>
    %c48_i32 = arith.constant 48 : i32
    %16 = vector.broadcast %c48_i32 : i32 to vector<72x256xi32>
    %17 = arith.cmpi sge, %12, %16 : vector<72x256xi32>
    %18 = arith.extui %17 : vector<72x256xi1> to vector<72x256xi32>
    %19 = arith.addi %15, %18 : vector<72x256xi32>
    %c24_i32_6 = arith.constant 24 : i32
    %20 = vector.broadcast %c24_i32_6 : i32 to vector<72x256xi32>
    %21 = arith.muli %20, %19 : vector<72x256xi32>
    %22 = arith.subi %12, %21 : vector<72x256xi32>
    %c8_i32 = arith.constant 8 : i32
    %23 = vector.broadcast %c8_i32 : i32 to vector<72x256xi32>
    %24 = arith.cmpi sge, %22, %23 : vector<72x256xi32>
    %25 = arith.extui %24 : vector<72x256xi1> to vector<72x256xi32>
    %c16_i32 = arith.constant 16 : i32
    %26 = vector.broadcast %c16_i32 : i32 to vector<72x256xi32>
    %27 = arith.cmpi sge, %22, %26 : vector<72x256xi32>
    %28 = arith.extui %27 : vector<72x256xi1> to vector<72x256xi32>
    %29 = arith.addi %25, %28 : vector<72x256xi32>
    %c0_7 = arith.constant 0 : index
    %c0_8 = arith.constant 0 : index
    %30 = vector.load %arg2[%c0_7, %c0_8] : memref<2x256xi32, #tpu.memory_space<vmem>>, vector<1x256xi32>
    %c2_i32 = arith.constant 2 : i32
    %31 = vector.broadcast %c2_i32 : i32 to vector<1x256xi32>
    %32 = arith.muli %31, %30 : vector<1x256xi32>
    %33 = vector.broadcast %32 : vector<1x256xi32> to vector<72x256xi32>
    %34 = arith.addi %33, %19 : vector<72x256xi32>
    %c1_i32 = arith.constant 1 : i32
    %35 = vector.broadcast %c1_i32 : i32 to vector<72x256xi32>
    %36 = arith.subi %34, %35 : vector<72x256xi32>
    %c1 = arith.constant 1 : index
    %c0_9 = arith.constant 0 : index
    %37 = vector.load %arg2[%c1, %c0_9] : memref<2x256xi32, #tpu.memory_space<vmem>>, vector<1x256xi32>
    %c2_i32_10 = arith.constant 2 : i32
    %38 = vector.broadcast %c2_i32_10 : i32 to vector<1x256xi32>
    %39 = arith.muli %38, %37 : vector<1x256xi32>
    %40 = vector.broadcast %39 : vector<1x256xi32> to vector<72x256xi32>
    %41 = arith.addi %40, %29 : vector<72x256xi32>
    %c1_i32_11 = arith.constant 1 : i32
    %42 = vector.broadcast %c1_i32_11 : i32 to vector<72x256xi32>
    %43 = arith.subi %41, %42 : vector<72x256xi32>
    %c0_i32 = arith.constant 0 : i32
    %44 = vector.broadcast %c0_i32 : i32 to vector<72x256xi32>
    %45 = arith.cmpi sge, %36, %44 : vector<72x256xi32>
    %c32_i32 = arith.constant 32 : i32
    %46 = vector.broadcast %c32_i32 : i32 to vector<72x256xi32>
    %47 = arith.cmpi slt, %36, %46 : vector<72x256xi32>
    %48 = arith.andi %45, %47 : vector<72x256xi1>
    %c0_i32_12 = arith.constant 0 : i32
    %49 = vector.broadcast %c0_i32_12 : i32 to vector<72x256xi32>
    %50 = arith.cmpi sge, %43, %49 : vector<72x256xi32>
    %51 = arith.andi %48, %50 : vector<72x256xi1>
    %c32_i32_13 = arith.constant 32 : i32
    %52 = vector.broadcast %c32_i32_13 : i32 to vector<72x256xi32>
    %53 = arith.cmpi slt, %43, %52 : vector<72x256xi32>
    %54 = arith.andi %51, %53 : vector<72x256xi1>
    %cst_14 = arith.constant 0.000000e+00 : f32
    %55 = vector.broadcast %cst_14 : f32 to vector<72x256xf32>
    %56 = arith.select %54, %11, %55 : vector<72x256xi1>, vector<72x256xf32>
    %c0_15 = arith.constant 0 : index
    %c0_16 = arith.constant 0 : index
    %57 = vector.load %arg5[%c0_15, %c0_16] : memref<16x72xbf16, #tpu.memory_space<vmem>>, vector<16x72xbf16>
    %58 = arith.truncf %56 : vector<72x256xf32> to vector<72x256xbf16>
    %cst_17 = arith.constant dense<0.000000e+00> : vector<16x256xf32>
    %59 = tpu.matmul %57, %58, %cst_17 {dimension_numbers = #tpu.dot_dimension_numbers<[1], [0], [0], [1], [0, 0, 1, 1], [], []>} : vector<16x72xbf16>, vector<72x256xbf16>, vector<16x256xf32> -> vector<16x256xf32>
    %c0_18 = arith.constant 0 : index
    %c0_19 = arith.constant 0 : index
    %60 = vector.load %arg6[%c0_18, %c0_19] : memref<16x1xf32, #tpu.memory_space<vmem>>, vector<16x1xf32>
    %61 = vector.broadcast %60 : vector<16x1xf32> to vector<16x256xf32>
    %62 = arith.addf %59, %61 : vector<16x256xf32>
    %63 = arith.negf %62 : vector<16x256xf32>
    %64 = math.exp %63 : vector<16x256xf32>
    %cst_20 = arith.constant 1.000000e+00 : f32
    %65 = vector.broadcast %cst_20 : f32 to vector<16x256xf32>
    %66 = arith.addf %65, %64 : vector<16x256xf32>
    %67 = arith.divf %65, %66 : vector<16x256xf32>
    %68 = arith.mulf %62, %67 : vector<16x256xf32>
    %c0_21 = arith.constant 0 : index
    %c0_22 = arith.constant 0 : index
    %69 = vector.load %arg7[%c0_21, %c0_22] : memref<12x16xbf16, #tpu.memory_space<vmem>>, vector<12x16xbf16>
    %70 = arith.truncf %68 : vector<16x256xf32> to vector<16x256xbf16>
    %cst_23 = arith.constant dense<0.000000e+00> : vector<12x256xf32>
    %71 = tpu.matmul %69, %70, %cst_23 {dimension_numbers = #tpu.dot_dimension_numbers<[1], [0], [0], [1], [0, 0, 1, 1], [], []>} : vector<12x16xbf16>, vector<16x256xbf16>, vector<12x256xf32> -> vector<12x256xf32>
    %c0_24 = arith.constant 0 : index
    %c0_25 = arith.constant 0 : index
    %72 = vector.load %arg8[%c0_24, %c0_25] : memref<12x1xf32, #tpu.memory_space<vmem>>, vector<12x1xf32>
    %73 = vector.broadcast %72 : vector<12x1xf32> to vector<12x256xf32>
    %74 = arith.addf %71, %73 : vector<12x256xf32>
    %75 = vector.extract_strided_slice %74 {offsets = [0, 0], sizes = [2, 256], strides = [1, 1]} : vector<12x256xf32> to vector<2x256xf32>
    %76 = vector.extract_strided_slice %74 {offsets = [2, 0], sizes = [2, 256], strides = [1, 1]} : vector<12x256xf32> to vector<2x256xf32>
    %cst_26 = arith.constant 5.000000e-01 : f32
    %77 = vector.broadcast %cst_26 : f32 to vector<2x256xf32>
    %78 = arith.mulf %76, %77 : vector<2x256xf32>
    %79 = arith.subf %75, %78 : vector<2x256xf32>
    %80 = arith.addf %75, %78 : vector<2x256xf32>
    %81 = tpu.concatenate %79, %80 in 0 : vector<2x256xf32>, vector<2x256xf32> -> vector<4x256xf32>
    %c0_27 = arith.constant 0 : index
    %c0_28 = arith.constant 0 : index
    %82 = vector.load %arg9[%c0_27, %c0_28] : memref<4x256xf32, #tpu.memory_space<vmem>>, vector<4x256xf32>
    tpu.vector_store %arg9[%c0_27, %c0_28], %81 {strides = array<i32>} : memref<4x256xf32, #tpu.memory_space<vmem>>, vector<4x256xf32>,
    %83 = tpu.iota {dimensions = array<i32: 0>} : vector<12x256xi32>
    %c4_i32 = arith.constant 4 : i32
    %84 = vector.broadcast %c4_i32 : i32 to vector<12x256xi32>
    %85 = arith.cmpi sge, %83, %84 : vector<12x256xi32>
    %c12_i32 = arith.constant 12 : i32
    %86 = vector.broadcast %c12_i32 : i32 to vector<12x256xi32>
    %87 = arith.cmpi slt, %83, %86 : vector<12x256xi32>
    %88 = arith.andi %85, %87 : vector<12x256xi1>
    %cst_29 = arith.constant -1.000000e+30 : f32
    %89 = vector.broadcast %cst_29 : f32 to vector<12x256xf32>
    %90 = arith.select %88, %74, %89 : vector<12x256xi1>, vector<12x256xf32>
    %cst_30 = arith.constant dense<0xFF800000> : vector<256xf32>
    %91 = vector.multi_reduction <maximumf>, %90, %cst_30 [0] : vector<12x256xf32> to vector<256xf32>
    %92 = vector.shape_cast %91 : vector<256xf32> to vector<1x256xf32>
    %c0_31 = arith.constant 0 : index
    %c0_32 = arith.constant 0 : index
    %93 = vector.load %arg10[%c0_31, %c0_32] : memref<1x256xf32, #tpu.memory_space<vmem>>, vector<1x256xf32>
    tpu.vector_store %arg10[%c0_31, %c0_32], %92 {strides = array<i32>} : memref<1x256xf32, #tpu.memory_space<vmem>>, vector<1x256xf32>,
    %94 = vector.broadcast %92 : vector<1x256xf32> to vector<12x256xf32>
    %95 = arith.cmpf oeq, %90, %94 : vector<12x256xf32>
    %c4_i32_33 = arith.constant 4 : i32
    %96 = vector.broadcast %c4_i32_33 : i32 to vector<12x256xi32>
    %97 = arith.subi %83, %96 : vector<12x256xi32>
    %98 = arith.sitofp %97 : vector<12x256xi32> to vector<12x256xf32>
    %cst_34 = arith.constant 1.000000e+09 : f32
    %99 = vector.broadcast %cst_34 : f32 to vector<12x256xf32>
    %100 = arith.select %95, %98, %99 : vector<12x256xi1>, vector<12x256xf32>
    %cst_35 = arith.constant dense<0x7F800000> : vector<256xf32>
    %101 = vector.multi_reduction <minimumf>, %100, %cst_35 [0] : vector<12x256xf32> to vector<256xf32>
    %102 = vector.shape_cast %101 : vector<256xf32> to vector<1x256xf32>
    %103 = arith.fptosi %102 : vector<1x256xf32> to vector<1x256xi32>
    %c0_36 = arith.constant 0 : index
    %c0_37 = arith.constant 0 : index
    %104 = vector.load %arg11[%c0_36, %c0_37] : memref<1x256xi32, #tpu.memory_space<vmem>>, vector<1x256xi32>
    tpu.vector_store %arg11[%c0_36, %c0_37], %103 {strides = array<i32>} : memref<1x256xi32, #tpu.memory_space<vmem>>, vector<1x256xi32>,
    return
  }
  func.func @transform_0(%arg0: i32) -> (i32, i32) {
    %c0_i32 = arith.constant 0 : i32
    %c0_i32_0 = arith.constant 0 : i32
    return %c0_i32, %arg0 : i32, i32
  }
  func.func @transform_1(%arg0: i32) -> (i32, i32) {
    %c0_i32 = arith.constant 0 : i32
    %c0_i32_0 = arith.constant 0 : i32
    return %c0_i32, %arg0 : i32, i32
  }
  func.func @transform_2(%arg0: i32) -> (i32, i32) {
    %c0_i32 = arith.constant 0 : i32
    %c0_i32_0 = arith.constant 0 : i32
    %c0_i32_1 = arith.constant 0 : i32
    return %c0_i32, %c0_i32_0 : i32, i32
  }
  func.func @transform_3(%arg0: i32) -> (i32, i32) {
    %c0_i32 = arith.constant 0 : i32
    %c0_i32_0 = arith.constant 0 : i32
    %c0_i32_1 = arith.constant 0 : i32
    return %c0_i32, %c0_i32_0 : i32, i32
  }
  func.func @transform_4(%arg0: i32) -> (i32, i32) {
    %c0_i32 = arith.constant 0 : i32
    %c0_i32_0 = arith.constant 0 : i32
    %c0_i32_1 = arith.constant 0 : i32
    return %c0_i32, %c0_i32_0 : i32, i32
  }
  func.func @transform_5(%arg0: i32) -> (i32, i32) {
    %c0_i32 = arith.constant 0 : i32
    %c0_i32_0 = arith.constant 0 : i32
    %c0_i32_1 = arith.constant 0 : i32
    return %c0_i32, %c0_i32_0 : i32, i32
  }
  func.func @transform_6(%arg0: i32) -> (i32, i32) {
    %c0_i32 = arith.constant 0 : i32
    %c0_i32_0 = arith.constant 0 : i32
    %c0_i32_1 = arith.constant 0 : i32
    return %c0_i32, %c0_i32_0 : i32, i32
  }
  func.func @transform_7(%arg0: i32) -> (i32, i32) {
    %c0_i32 = arith.constant 0 : i32
    %c0_i32_0 = arith.constant 0 : i32
    %c0_i32_1 = arith.constant 0 : i32
    return %c0_i32, %c0_i32_0 : i32, i32
  }
  func.func @transform_8(%arg0: i32) -> (i32, i32) {
    %c0_i32 = arith.constant 0 : i32
    %c0_i32_0 = arith.constant 0 : i32
    return %c0_i32, %arg0 : i32, i32
  }
  func.func @transform_9(%arg0: i32) -> (i32, i32) {
    %c0_i32 = arith.constant 0 : i32
    %c0_i32_0 = arith.constant 0 : i32
    return %c0_i32, %arg0 : i32, i32
  }
  func.func @transform_10(%arg0: i32) -> (i32, i32) {
    %c0_i32 = arith.constant 0 : i32
    %c0_i32_0 = arith.constant 0 : i32
    return %c0_i32, %arg0 : i32, i32
  }
}

</mosaic_0001>

<llo_original>
// kernel: tile.8
$region0: #{tile.8}
  #allocation0 [shape = 's32[1]{0}', space=sflag, size = 0x4, scoped, tag = 'scoped memory for tile.8']
  %s0 = inlined_call_operand.vmem [shape: f32[8], index: 0, kind: input, shape index: {}]
  %s1 = inlined_call_operand.vmem [shape: f32[9,8], index: 1, kind: output, shape index: {}]
  // Predicated region
  $region2: #{tile.8} parent=0 // pred_check
    _
  $region3: #{tile.8} parent=0 // pred_check_branch
    %3 = sbr.rel (0) target = $region5
  $region4: #{tile.8} parent=0 // pred_region
    _
  $region5: #{tile.8} parent=0 // pred_fallthru
    _
  %v4 = vld [vmem:[%s0] ss:$0 sm:$0xff]
  %5 = vst [vmem:[%s1] sm:$0xff] %v4
  %s6 = scalar_lea.vmem %s1, 8
  %7 = vst [vmem:[%s6] sm:$0xff] %v4

// kernel: tile.0
$region0: #{tile.0}
  %s0 = inlined_call_operand.vmem [shape: f32[9,8], index: 0, kind: input, shape index: {}]
  %s1 = inlined_call_operand.vmem [shape: f32[72,1], index: 1, kind: output, shape index: {}]
  %v2 = vld [vmem:[%s0] sm:$0xff]
  %vm3 = vcmask 7168
  %4 = vst.msk [vmem:[%s1] ss:$8 sm:$0xf] %vm3, %v2
  %5 = vst.msk [vmem:[%s1] ss:$8 sm:$0xf0] %vm3, %v2
  %s6 = scalar_lea.vmem %s0, 8
  %v7 = vld [vmem:[%s6] sm:$0x1]
  %vm8 = vcmask 7168
  %s9 = scalar_lea.vmem %s1, 64
  %10 = vst.msk [vmem:[%s9] sm:$0x1] %vm8, %v7
  %v11 = vld [vmem:[%s0] sm:$0xff]
  %12 = vrot.lane.b32.xlu0 %v11, 127
  %v13 = vpop.permute.xlu0 %12
  %vm14 = vcmask 7168
  %s15 = scalar_lea.vmem %s1, 1
  %16 = vst.msk [vmem:[%s15] ss:$8 sm:$0xf] %vm14, %v13
  %s17 = scalar_lea.vmem %s1, 1
  %18 = vst.msk [vmem:[%s17] ss:$8 sm:$0xf0] %vm14, %v13
  %s19 = scalar_lea.vmem %s0, 8
  %v20 = vld [vmem:[%s19] sm:$0x1]
  %21 = vrot.lane.b32.xlu0 %v20, 127
  %v22 = vpop.permute.xlu0 %21
  %vm23 = vcmask 7168
  %s24 = scalar_lea.vmem %s1, 65
  %25 = vst.msk [vmem:[%s24] sm:$0x1] %vm23, %v22
  %v26 = vld [vmem:[%s0] sm:$0xff]
  %27 = vrot.lane.b32.xlu0 %v26, 126
  %v28 = vpop.permute.xlu0 %27
  %vm29 = vcmask 7168
  %s30 = scalar_lea.vmem %s1, 2
  %31 = vst.msk [vmem:[%s30] ss:$8 sm:$0xf] %vm29, %v28
  %s32 = scalar_lea.vmem %s1, 2
  %33 = vst.msk [vmem:[%s32] ss:$8 sm:$0xf0] %vm29, %v28
  %s34 = scalar_lea.vmem %s0, 8
  %v35 = vld [vmem:[%s34] sm:$0x1]
  %36 = vrot.lane.b32.xlu0 %v35, 126
  %v37 = vpop.permute.xlu0 %36
  %vm38 = vcmask 7168
  %s39 = scalar_lea.vmem %s1, 66
  %40 = vst.msk [vmem:[%s39] sm:$0x1] %vm38, %v37
  %v41 = vld [vmem:[%s0] sm:$0xff]
  %42 = vrot.lane.b32.xlu0 %v41, 125
  %v43 = vpop.permute.xlu0 %42
  %vm44 = vcmask 7168
  %s45 = scalar_lea.vmem %s1, 3
  %46 = vst.msk [vmem:[%s45] ss:$8 sm:$0xf] %vm44, %v43
  %s47 = scalar_lea.vmem %s1, 3
  %48 = vst.msk [vmem:[%s47] ss:$8 sm:$0xf0] %vm44, %v43
  %s49 = scalar_lea.vmem %s0, 8
  %v50 = vld [vmem:[%s49] sm:$0x1]
  %51 = vrot.lane.b32.xlu0 %v50, 125
  %v52 = vpop.permute.xlu0 %51
  %vm53 = vcmask 7168
  %s54 = scalar_lea.vmem %s1, 67
  %55 = vst.msk [vmem:[%s54] sm:$0x1] %vm53, %v52
  %v56 = vld [vmem:[%s0] sm:$0xff]
  %57 = vrot.lane.b32.xlu0 %v56, 124
  %v58 = vpop.permute.xlu0 %57
  %vm59 = vcmask 7168
  %s60 = scalar_lea.vmem %s1, 4
  %61 = vst.msk [vmem:[%s60] ss:$8 sm:$0xf] %vm59, %v58
  %s62 = scalar_lea.vmem %s1, 4
  %63 = vst.msk [vmem:[%s62] ss:$8 sm:$0xf0] %vm59, %v58
  %s64 = scalar_lea.vmem %s0, 8
  %v65 = vld [vmem:[%s64] sm:$0x1]
  %66 = vrot.lane.b32.xlu0 %v65, 124
  %v67 = vpop.permute.xlu0 %66
  %vm68 = vcmask 7168
  %s69 = scalar_lea.vmem %s1, 68
  %70 = vst.msk [vmem:[%s69] sm:$0x1] %vm68, %v67
  %v71 = vld [vmem:[%s0] sm:$0xff]
  %72 = vrot.lane.b32.xlu0 %v71, 123
  %v73 = vpop.permute.xlu0 %72
  %vm74 = vcmask 7168
  %s75 = scalar_lea.vmem %s1, 5
  %76 = vst.msk [vmem:[%s75] ss:$8 sm:$0xf] %vm74, %v73
  %s77 = scalar_lea.vmem %s1, 5
  %78 = vst.msk [vmem:[%s77] ss:$8 sm:$0xf0] %vm74, %v73
  %s79 = scalar_lea.vmem %s0, 8
  %v80 = vld [vmem:[%s79] sm:$0x1]
  %81 = vrot.lane.b32.xlu0 %v80, 123
  %v82 = vpop.permute.xlu0 %81
  %vm83 = vcmask 7168
  %s84 = scalar_lea.vmem %s1, 69
  %85 = vst.msk [vmem:[%s84] sm:$0x1] %vm83, %v82
  %v86 = vld [vmem:[%s0] sm:$0xff]
  %87 = vrot.lane.b32.xlu0 %v86, 122
  %v88 = vpop.permute.xlu0 %87
  %vm89 = vcmask 7168
  %s90 = scalar_lea.vmem %s1, 6
  %91 = vst.msk [vmem:[%s90] ss:$8 sm:$0xf] %vm89, %v88
  %s92 = scalar_lea.vmem %s1, 6
  %93 = vst.msk [vmem:[%s92] ss:$8 sm:$0xf0] %vm89, %v88
  %s94 = scalar_lea.vmem %s0, 8
  %v95 = vld [vmem:[%s94] sm:$0x1]
  %96 = vrot.lane.b32.xlu0 %v95, 122
  %v97 = vpop.permute.xlu0 %96
  %vm98 = vcmask 7168
  %s99 = scalar_lea.vmem %s1, 70
  %100 = vst.msk [vmem:[%s99] sm:$0x1] %vm98, %v97
  %v101 = vld [vmem:[%s0] sm:$0xff]
  %102 = vrot.lane.b32.xlu0 %v101, 121
  %v103 = vpop.permute.xlu0 %102
  %vm104 = vcmask 7168
  %s105 = scalar_lea.vmem %s1, 7
  %106 = vst.msk [vmem:[%s105] ss:$8 sm:$0xf] %vm104, %v103
  %s107 = scalar_lea.vmem %s1, 7
  %108 = vst.msk [vmem:[%s107] ss:$8 sm:$0xf0] %vm104, %v103
  %s109 = scalar_lea.vmem %s0, 8
  %v110 = vld [vmem:[%s109] sm:$0x1]
  %111 = vrot.lane.b32.xlu0 %v110, 121
  %v112 = vpop.permute.xlu0 %111
  %vm113 = vcmask 7168
  %s114 = scalar_lea.vmem %s1, 71
  %115 = vst.msk [vmem:[%s114] sm:$0x1] %vm113, %v112

// kernel: yolov8_detector_forward.1
$region0: #{yolov8_detector_forward.1}
  #allocation0 [shape = 'u32[]', space=smem, size = 0x4, offset = 0x4, fixed_abs, tag = 'smem constant byte address 0x4 - core index']
  #allocation1 [shape = 'u32[72,128]{1,0:T(1,128)}', space=vmem, size = 0x9000, scoped, tag = 'internal scratch']
  %s0 = inlined_call_operand.vmem [shape: bf16[147,512], index: 0, kind: input, shape index: {}]
  %s1 = inlined_call_operand.vmem [shape: s32[2,512], index: 1, kind: input, shape index: {}]
  %s2 = inlined_call_operand.vmem [shape: bf16[72,147], index: 2, kind: input, shape index: {}]
  %s3 = inlined_call_operand.vmem [shape: f32[72,1], index: 3, kind: input, shape index: {}]
  %s4 = inlined_call_operand.vmem [shape: bf16[16,72], index: 4, kind: input, shape index: {}]
  %s5 = inlined_call_operand.vmem [shape: f32[16,1], index: 5, kind: input, shape index: {}]
  %s6 = inlined_call_operand.vmem [shape: bf16[12,16], index: 6, kind: input, shape index: {}]
  %s7 = inlined_call_operand.vmem [shape: f32[12,1], index: 7, kind: input, shape index: {}]
  %s8 = inlined_call_operand.hbm [shape: f32[4,512], index: 8, kind: output, shape index: {0}]
  %s9 = inlined_call_operand.vmem [shape: f32[1,512], index: 9, kind: output, shape index: {1}]
  %s10 = inlined_call_operand.vmem [shape: s32[1,512], index: 10, kind: output, shape index: {2}]
  %11 = xla_tuple %s8, %s9, %s10
  %s12 = sld [smem:[#allocation0]]
  $region119: #{yolov8_detector_forward.1} parent=0
    _
  %s14 = ssub.s32 1, %s12
  %s15 = scalar_select 0, %s14, %s12
  $region1: #{yolov8_detector_forward.1} parent=0
    #allocation2 [shape = 'u8[155648]{0}', space=vmem, size = 0x26000, scoped, tag = 'input window, operand 0']
    #allocation3 [shape = 'u8[8192]{0}', space=vmem, size = 0x2000, scoped, tag = 'output window, operand 0']
    #allocation4 [shape = 's32[2]{0}', space=sflag, size = 0x8, scoped, tag = 'scoped memory for yolov8_detector_forward.1']
    %16 = vsyncpa [#allocation4], 0
    %s17 = scalar_lea.sflag [#allocation4], 1
    %18 = vsyncpa %s17, 0
    loop: start=0, step=1, limit=4
    $region2: #{yolov8_detector_forward.1} parent=1 // loop_pre_header
      _
    $region3: #{yolov8_detector_forward.1} parent=1 // loop_header
      %s20 = sphi 0, %s24
      %p21 = scmp.ge.s32.totalorder %s20, 4
      %s30 = sphi 0, %s32
      %s33 = sphi 0, %s30
      %s34 = sphi 0, %s33
      %s50 = sphi 0, %s34
      %s56 = sphi 0, %s58
      %s59 = sphi 0, %s56
      %s60 = sphi 0, %s59
      %s76 = sphi 0, %s60
      %s80 = sphi 0, %s80
      %s82 = sphi 0, %s80
      %s83 = sphi 0, %s82
      %s97 = sphi 0, %s83
      %s101 = sphi 0, %s101
      %s103 = sphi 0, %s101
      %s104 = sphi 0, %s103
      %s118 = sphi 0, %s104
      %s122 = sphi 0, %s122
      %s124 = sphi 0, %s122
      %s125 = sphi 0, %s124
      %s139 = sphi 0, %s125
      %s143 = sphi 0, %s143
      %s145 = sphi 0, %s143
      %s146 = sphi 0, %s145
      %s160 = sphi 0, %s146
      %s164 = sphi 0, %s164
      %s166 = sphi 0, %s164
      %s167 = sphi 0, %s166
      %s181 = sphi 0, %s167
      %s185 = sphi 0, %s185
      %s187 = sphi 0, %s185
      %s188 = sphi 0, %s187
      %s202 = sphi 0, %s188
      %s208 = sphi 0, %s210
      %s211 = sphi 0, %s208
      %s212 = sphi 0, %s211
      %s228 = sphi 0, %s212
      %s234 = sphi 0, %s236
      %s237 = sphi 0, %s234
      %s238 = sphi 0, %s237
      %s254 = sphi 0, %s238
      %s260 = sphi 0, %s262
      %s263 = sphi 0, %s260
      %s264 = sphi 0, %s263
      %s280 = sphi 0, %s264
    $region4: #{yolov8_detector_forward.1} parent=1 // loop_header_branch
      %23 = sbr.rel (%p21) target = $region8
    $region5: #{yolov8_detector_forward.1} parent=1 // loop_body
      %s25 = ssub.s32 %s20, 1
      %s26 = ssub.s32 %s20, 2
      %s27 = sadd.s32 %s20, 1
      %s28 = ssub.s32 %s20, %s27
      %p29 = scmp.eq.s32.totalorder %s28, 0
      %s31 = sadd.s32 %s30, 1
      %s32 = scalar_select %p29, %s30, %s31
      %p35 = pneg %p29
      %p36 = scmp.eq.s32.totalorder %s20, 1
      %p37 = por %p35, %p36
      %p38 = scmp.ne.s32.totalorder %s30, %s33
      %p39 = scmp.eq.s32.totalorder %s20, 0
      %p40 = por %p38, %p39
      %p41 = scmp.ne.s32.totalorder %s30, %s33
      %p42 = scmp.eq.s32.totalorder %s25, 1
      %p43 = por %p41, %p42
      %p44 = scmp.ne.s32.totalorder %s33, %s34
      %p45 = scmp.eq.s32.totalorder %s25, 0
      %p46 = por %p44, %p45
      %p47 = scmp.ne.s32.totalorder %s33, %s34
      %p48 = scmp.eq.s32.totalorder %s26, 1
      %p49 = por %p47, %p48
      %p51 = scmp.ne.s32.totalorder %s34, %s50
      %p52 = scmp.eq.s32.totalorder %s26, 0
      %p53 = por %p51, %p52
      %s54 = ssub.s32 %s20, %s27
      %p55 = scmp.eq.s32.totalorder %s54, 0
      %s57 = sadd.s32 %s56, 1
      %s58 = scalar_select %p55, %s56, %s57
      %p61 = pneg %p55
      %p62 = scmp.eq.s32.totalorder %s20, 1
      %p63 = por %p61, %p62
      %p64 = scmp.ne.s32.totalorder %s56, %s59
      %p65 = scmp.eq.s32.totalorder %s20, 0
      %p66 = por %p64, %p65
      %p67 = scmp.ne.s32.totalorder %s56, %s59
      %p68 = scmp.eq.s32.totalorder %s25, 1
      %p69 = por %p67, %p68
      %p70 = scmp.ne.s32.totalorder %s59, %s60
      %p71 = scmp.eq.s32.totalorder %s25, 0
      %p72 = por %p70, %p71
      %p73 = scmp.ne.s32.totalorder %s59, %s60
      %p74 = scmp.eq.s32.totalorder %s26, 1
      %p75 = por %p73, %p74
      %p77 = scmp.ne.s32.totalorder %s60, %s76
      %p78 = scmp.eq.s32.totalorder %s26, 0
      %p79 = por %p77, %p78
      %s81 = sadd.s32 %s80, 1
      %p84 = scmp.eq.s32.totalorder %s20, 1
      %p85 = scmp.ne.s32.totalorder %s80, %s82
      %p86 = scmp.eq.s32.totalorder %s20, 0
      %p87 = por %p85, %p86
      %p88 = scmp.ne.s32.totalorder %s80, %s82
      %p89 = scmp.eq.s32.totalorder %s25, 1
      %p90 = por %p88, %p89
      %p91 = scmp.ne.s32.totalorder %s82, %s83
      %p92 = scmp.eq.s32.totalorder %s25, 0
      %p93 = por %p91, %p92
      %p94 = scmp.ne.s32.totalorder %s82, %s83
      %p95 = scmp.eq.s32.totalorder %s26, 1
      %p96 = por %p94, %p95
      %p98 = scmp.ne.s32.totalorder %s83, %s97
      %p99 = scmp.eq.s32.totalorder %s26, 0
      %p100 = por %p98, %p99
      %s102 = sadd.s32 %s101, 1
      %p105 = scmp.eq.s32.totalorder %s20, 1
      %p106 = scmp.ne.s32.totalorder %s101, %s103
      %p107 = scmp.eq.s32.totalorder %s20, 0
      %p108 = por %p106, %p107
      %p109 = scmp.ne.s32.totalorder %s101, %s103
      %p110 = scmp.eq.s32.totalorder %s25, 1
      %p111 = por %p109, %p110
      %p112 = scmp.ne.s32.totalorder %s103, %s104
      %p113 = scmp.eq.s32.totalorder %s25, 0
      %p114 = por %p112, %p113
      %p115 = scmp.ne.s32.totalorder %s103, %s104
      %p116 = scmp.eq.s32.totalorder %s26, 1
      %p117 = por %p115, %p116
      %p119 = scmp.ne.s32.totalorder %s104, %s118
      %p120 = scmp.eq.s32.totalorder %s26, 0
      %p121 = por %p119, %p120
      %s123 = sadd.s32 %s122, 1
      %p126 = scmp.eq.s32.totalorder %s20, 1
      %p127 = scmp.ne.s32.totalorder %s122, %s124
      %p128 = scmp.eq.s32.totalorder %s20, 0
      %p129 = por %p127, %p128
      %p130 = scmp.ne.s32.totalorder %s122, %s124
      %p131 = scmp.eq.s32.totalorder %s25, 1
      %p132 = por %p130, %p131
      %p133 = scmp.ne.s32.totalorder %s124, %s125
      %p134 = scmp.eq.s32.totalorder %s25, 0
      %p135 = por %p133, %p134
      %p136 = scmp.ne.s32.totalorder %s124, %s125
      %p137 = scmp.eq.s32.totalorder %s26, 1
      %p138 = por %p136, %p137
      %p140 = scmp.ne.s32.totalorder %s125, %s139
      %p141 = scmp.eq.s32.totalorder %s26, 0
      %p142 = por %p140, %p141
      %s144 = sadd.s32 %s143, 1
      %p147 = scmp.eq.s32.totalorder %s20, 1
      %p148 = scmp.ne.s32.totalorder %s143, %s145
      %p149 = scmp.eq.s32.totalorder %s20, 0
      %p150 = por %p148, %p149
      %p151 = scmp.ne.s32.totalorder %s143, %s145
      %p152 = scmp.eq.s32.totalorder %s25, 1
      %p153 = por %p151, %p152
      %p154 = scmp.ne.s32.totalorder %s145, %s146
      %p155 = scmp.eq.s32.totalorder %s25, 0
      %p156 = por %p154, %p155
      %p157 = scmp.ne.s32.totalorder %s145, %s146
      %p158 = scmp.eq.s32.totalorder %s26, 1
      %p159 = por %p157, %p158
      %p161 = scmp.ne.s32.totalorder %s146, %s160
      %p162 = scmp.eq.s32.totalorder %s26, 0
      %p163 = por %p161, %p162
      %s165 = sadd.s32 %s164, 1
      %p168 = scmp.eq.s32.totalorder %s20, 1
      %p169 = scmp.ne.s32.totalorder %s164, %s166
      %p170 = scmp.eq.s32.totalorder %s20, 0
      %p171 = por %p169, %p170
      %p172 = scmp.ne.s32.totalorder %s164, %s166
      %p173 = scmp.eq.s32.totalorder %s25, 1
      %p174 = por %p172, %p173
      %p175 = scmp.ne.s32.totalorder %s166, %s167
      %p176 = scmp.eq.s32.totalorder %s25, 0
      %p177 = por %p175, %p176
      %p178 = scmp.ne.s32.totalorder %s166, %s167
      %p179 = scmp.eq.s32.totalorder %s26, 1
      %p180 = por %p178, %p179
      %p182 = scmp.ne.s32.totalorder %s167, %s181
      %p183 = scmp.eq.s32.totalorder %s26, 0
      %p184 = por %p182, %p183
      %s186 = sadd.s32 %s185, 1
      %p189 = scmp.eq.s32.totalorder %s20, 1
      %p190 = scmp.ne.s32.totalorder %s185, %s187
      %p191 = scmp.eq.s32.totalorder %s20, 0
      %p192 = por %p190, %p191
      %p193 = scmp.ne.s32.totalorder %s185, %s187
      %p194 = scmp.eq.s32.totalorder %s25, 1
      %p195 = por %p193, %p194
      %p196 = scmp.ne.s32.totalorder %s187, %s188
      %p197 = scmp.eq.s32.totalorder %s25, 0
      %p198 = por %p196, %p197
      %p199 = scmp.ne.s32.totalorder %s187, %s188
      %p200 = scmp.eq.s32.totalorder %s26, 1
      %p201 = por %p199, %p200
      %p203 = scmp.ne.s32.totalorder %s188, %s202
      %p204 = scmp.eq.s32.totalorder %s26, 0
      %p205 = por %p203, %p204
      %s206 = ssub.s32 %s20, %s27
      %p207 = scmp.eq.s32.totalorder %s206, 0
      %s209 = sadd.s32 %s208, 1
      %s210 = scalar_select %p207, %s208, %s209
      %p213 = pneg %p207
      %p214 = scmp.eq.s32.totalorder %s20, 1
      %p215 = por %p213, %p214
      %p216 = scmp.ne.s32.totalorder %s208, %s211
      %p217 = scmp.eq.s32.totalorder %s20, 0
      %p218 = por %p216, %p217
      %p219 = scmp.ne.s32.totalorder %s208, %s211
      %p220 = scmp.eq.s32.totalorder %s25, 1
      %p221 = por %p219, %p220
      %p222 = scmp.ne.s32.totalorder %s211, %s212
      %p223 = scmp.eq.s32.totalorder %s25, 0
      %p224 = por %p222, %p223
      %p225 = scmp.ne.s32.totalorder %s211, %s212
      %p226 = scmp.eq.s32.totalorder %s26, 1
      %p227 = por %p225, %p226
      %p229 = scmp.ne.s32.totalorder %s212, %s228
      %p230 = scmp.eq.s32.totalorder %s26, 0
      %p231 = por %p229, %p230
      %s232 = ssub.s32 %s20, %s27
      %p233 = scmp.eq.s32.totalorder %s232, 0
      %s235 = sadd.s32 %s234, 1
      %s236 = scalar_select %p233, %s234, %s235
      %p239 = pneg %p233
      %p240 = scmp.eq.s32.totalorder %s20, 1
      %p241 = por %p239, %p240
      %p242 = scmp.ne.s32.totalorder %s234, %s237
      %p243 = scmp.eq.s32.totalorder %s20, 0
      %p244 = por %p242, %p243
      %p245 = scmp.ne.s32.totalorder %s234, %s237
      %p246 = scmp.eq.s32.totalorder %s25, 1
      %p247 = por %p245, %p246
      %p248 = scmp.ne.s32.totalorder %s237, %s238
      %p249 = scmp.eq.s32.totalorder %s25, 0
      %p250 = por %p248, %p249
      %p251 = scmp.ne.s32.totalorder %s237, %s238
      %p252 = scmp.eq.s32.totalorder %s26, 1
      %p253 = por %p251, %p252
      %p255 = scmp.ne.s32.totalorder %s238, %s254
      %p256 = scmp.eq.s32.totalorder %s26, 0
      %p257 = por %p255, %p256
      %s258 = ssub.s32 %s20, %s27
      %p259 = scmp.eq.s32.totalorder %s258, 0
      %s261 = sadd.s32 %s260, 1
      %s262 = scalar_select %p259, %s260, %s261
      %p265 = pneg %p259
      %p266 = scmp.eq.s32.totalorder %s20, 1
      %p267 = por %p265, %p266
      %p268 = scmp.ne.s32.totalorder %s260, %s263
      %p269 = scmp.eq.s32.totalorder %s20, 0
      %p270 = por %p268, %p269
      %p271 = scmp.ne.s32.totalorder %s260, %s263
      %p272 = scmp.eq.s32.totalorder %s25, 1
      %p273 = por %p271, %p272
      %p274 = scmp.ne.s32.totalorder %s263, %s264
      %p275 = scmp.eq.s32.totalorder %s25, 0
      %p276 = por %p274, %p275
      %p277 = scmp.ne.s32.totalorder %s263, %s264
      %p278 = scmp.eq.s32.totalorder %s26, 1
      %p279 = por %p277, %p278
      %p281 = scmp.ne.s32.totalorder %s264, %s280
      %p282 = scmp.eq.s32.totalorder %s26, 0
      %p283 = por %p281, %p282
      %p284 = scmp.le.s32.totalorder 1, %s20
      %p285 = scmp.lt.s32.totalorder %s20, 3
      %p286 = pnand %p284, %p285
      %p287 = pneg %p286
      // Predicated region
      $region9: #{yolov8_detector_forward.1} parent=5 // pred_check
        _
      $region10: #{yolov8_detector_forward.1} parent=5 // pred_check_branch
        %289 = sbr.rel (%p286) target = $region12
      $region11: #{yolov8_detector_forward.1} parent=5 // pred_region
        %s290 = ssub.s32 %s20, 1
        // Predicated region
        $region13: #{yolov8_detector_forward.1} parent=11 // pred_check
          %p291 = pneg %p93
        $region14: #{yolov8_detector_forward.1} parent=11 // pred_check_branch
          %293 = sbr.rel (%p291) target = $region16
        $region15: #{yolov8_detector_forward.1} parent=11 // pred_region
          _
        $region16: #{yolov8_detector_forward.1} parent=11 // pred_fallthru
          _
        // Predicated region
        $region17: #{yolov8_detector_forward.1} parent=11 // pred_check
          %p294 = pneg %p114
        $region18: #{yolov8_detector_forward.1} parent=11 // pred_check_branch
          %296 = sbr.rel (%p294) target = $region20
        $region19: #{yolov8_detector_forward.1} parent=11 // pred_region
          _
        $region20: #{yolov8_detector_forward.1} parent=11 // pred_fallthru
          _
        // Predicated region
        $region21: #{yolov8_detector_forward.1} parent=11 // pred_check
          %p297 = pneg %p135
        $region22: #{yolov8_detector_forward.1} parent=11 // pred_check_branch
          %299 = sbr.rel (%p297) target = $region24
        $region23: #{yolov8_detector_forward.1} parent=11 // pred_region
          _
        $region24: #{yolov8_detector_forward.1} parent=11 // pred_fallthru
          _
        // Predicated region
        $region25: #{yolov8_detector_forward.1} parent=11 // pred_check
          %p300 = pneg %p156
        $region26: #{yolov8_detector_forward.1} parent=11 // pred_check_branch
          %302 = sbr.rel (%p300) target = $region28
        $region27: #{yolov8_detector_forward.1} parent=11 // pred_region
          _
        $region28: #{yolov8_detector_forward.1} parent=11 // pred_fallthru
          _
        // Predicated region
        $region29: #{yolov8_detector_forward.1} parent=11 // pred_check
          %p303 = pneg %p177
        $region30: #{yolov8_detector_forward.1} parent=11 // pred_check_branch
          %305 = sbr.rel (%p303) target = $region32
        $region31: #{yolov8_detector_forward.1} parent=11 // pred_region
          _
        $region32: #{yolov8_detector_forward.1} parent=11 // pred_fallthru
          _
        // Predicated region
        $region33: #{yolov8_detector_forward.1} parent=11 // pred_check
          %p306 = pneg %p198
        $region34: #{yolov8_detector_forward.1} parent=11 // pred_check_branch
          %308 = sbr.rel (%p306) target = $region36
        $region35: #{yolov8_detector_forward.1} parent=11 // pred_region
          _
        $region36: #{yolov8_detector_forward.1} parent=11 // pred_fallthru
          _
      $region12: #{yolov8_detector_forward.1} parent=5 // pred_fallthru
        _
      %p309 = scmp.lt.s32.totalorder %s20, 2
      // Predicated region
      $region37: #{yolov8_detector_forward.1} parent=5 // pred_check
        %p310 = pneg %p309
      $region38: #{yolov8_detector_forward.1} parent=5 // pred_check_branch
        %312 = sbr.rel (%p310) target = $region40
      $region39: #{yolov8_detector_forward.1} parent=5 // pred_region
        // Predicated region
        $region41: #{yolov8_detector_forward.1} parent=39 // pred_check
          %p313 = pneg %p40
        $region42: #{yolov8_detector_forward.1} parent=39 // pred_check_branch
          %315 = sbr.rel (%p313) target = $region44
        $region43: #{yolov8_detector_forward.1} parent=39 // pred_region
          %s316 = sand.u32 %s30, 1
          %s317 = sand.u32 %s30, 1
          %s318 = smul.addr %s317, 152
          %s319 = scalar_lea.vmem [#allocation2], %s318
          %s320 = smul.u32 2, %s20
          %s321 = smul.addr %s320, 4
          %s322 = scalar_lea.vmem %s0, %s321
          // Predicated region
          $region45: #{yolov8_detector_forward.1} parent=43 // pred_check
            _
          $region46: #{yolov8_detector_forward.1} parent=43 // pred_check_branch
            %324 = sbr.rel (0) target = $region48
          $region47: #{yolov8_detector_forward.1} parent=43 // pred_region
            // Predicated region
            $region49: #{yolov8_detector_forward.1} parent=47 // pred_check
              _
            $region50: #{yolov8_detector_forward.1} parent=47 // pred_check_branch
              %326 = sbr.rel (0) target = $region52
            $region51: #{yolov8_detector_forward.1} parent=47 // pred_region
              // Predicated region
              $region64: #{yolov8_detector_forward.1} parent=51 // pred_check
                _
              $region65: #{yolov8_detector_forward.1} parent=51 // pred_check_branch
                %378 = sbr.rel (0) target = $region67
              $region66: #{yolov8_detector_forward.1} parent=51 // pred_region
                loop: start=0, step=1, limit=1
                $region68: #{yolov8_detector_forward.1} parent=66 // loop_pre_header
                  _
                $region69: #{yolov8_detector_forward.1} parent=66 // loop_header
                  %s380 = sphi 0, %s384
                  %p381 = scmp.ge.s32.totalorder %s380, 1
                  %s385 = sphi %s322, %s322
                  %s386 = sphi %s319, %s319
                $region70: #{yolov8_detector_forward.1} parent=66 // loop_header_branch
                  %383 = sbr.rel (%p381) target = $region74
                $region71: #{yolov8_detector_forward.1} parent=66 // loop_body
                  %v387 = vld [vmem:[%s385] sm:$0xff]
                  %388 = vst [vmem:[%s386] sm:$0xff] %v387
                  %v389 = vld [vmem:[%s385 + $0x10] sm:$0xff]
                  %390 = vst [vmem:[%s386 + $0x8] sm:$0xff] %v389
                  %v391 = vld [vmem:[%s385 + $0x20] sm:$0xff]
                  %392 = vst [vmem:[%s386 + $0x10] sm:$0xff] %v391
                  %v393 = vld [vmem:[%s385 + $0x30] sm:$0xff]
                  %394 = vst [vmem:[%s386 + $0x18] sm:$0xff] %v393
                  %v395 = vld [vmem:[%s385 + $0x40] sm:$0xff]
                  %396 = vst [vmem:[%s386 + $0x20] sm:$0xff] %v395
                  %v397 = vld [vmem:[%s385 + $0x50] sm:$0xff]
                  %398 = vst [vmem:[%s386 + $0x28] sm:$0xff] %v397
                  %v399 = vld [vmem:[%s385 + $0x60] sm:$0xff]
                  %400 = vst [vmem:[%s386 + $0x30] sm:$0xff] %v399
                  %v401 = vld [vmem:[%s385 + $0x70] sm:$0xff]
                  %402 = vst [vmem:[%s386 + $0x38] sm:$0xff] %v401
                  %v403 = vld [vmem:[%s385 + $0x80] sm:$0xff]
                  %404 = vst [vmem:[%s386 + $0x40] sm:$0xff] %v403
                  %v405 = vld [vmem:[%s385 + $0x90] sm:$0xff]
                  %406 = vst [vmem:[%s386 + $0x48] sm:$0xff] %v405
                  %v407 = vld [vmem:[%s385 + $0xa0] sm:$0xff]
                  %408 = vst [vmem:[%s386 + $0x50] sm:$0xff] %v407
                  %v409 = vld [vmem:[%s385 + $0xb0] sm:$0xff]
                  %410 = vst [vmem:[%s386 + $0x58] sm:$0xff] %v409
                  %v411 = vld [vmem:[%s385 + $0xc0] sm:$0xff]
                  %412 = vst [vmem:[%s386 + $0x60] sm:$0xff] %v411
                  %v413 = vld [vmem:[%s385 + $0xd0] sm:$0xff]
                  %414 = vst [vmem:[%s386 + $0x68] sm:$0xff] %v413
                  %v415 = vld [vmem:[%s385 + $0xe0] sm:$0xff]
                  %416 = vst [vmem:[%s386 + $0x70] sm:$0xff] %v415
                  %v417 = vld [vmem:[%s385 + $0xf0] sm:$0xff]
                  %418 = vst [vmem:[%s386 + $0x78] sm:$0xff] %v417
                  %v419 = vld [vmem:[%s385 + $0x100] sm:$0xff]
                  %420 = vst [vmem:[%s386 + $0x80] sm:$0xff] %v419
                  %v421 = vld [vmem:[%s385 + $0x110] sm:$0xff]
                  %422 = vst [vmem:[%s386 + $0x88] sm:$0xff] %v421
                  %v423 = vld [vmem:[%s385 + $0x120] sm:$0xff]
                  %424 = vst [vmem:[%s386 + $0x90] sm:$0xff] %v423
                $region72: #{yolov8_detector_forward.1} parent=66 // loop_footer
                  %s384 = sadd.s32 1, %s380
                $region73: #{yolov8_detector_forward.1} parent=66 // loop_footer_branch
                  %379 = sbr.rel target = $region69
                $region74: #{yolov8_detector_forward.1} parent=66 // loop_exit
                  _
              $region67: #{yolov8_detector_forward.1} parent=51 // pred_fallthru
                _
              // Predicated region
              $region75: #{yolov8_detector_forward.1} parent=51 // pred_check
                _
              $region76: #{yolov8_detector_forward.1} parent=51 // pred_check_branch
                %426 = sbr.rel target = $region78
              $region77: #{yolov8_detector_forward.1} parent=51 // pred_region
                _
              $region78: #{yolov8_detector_forward.1} parent=51 // pred_fallthru
                _
            $region52: #{yolov8_detector_forward.1} parent=47 // pred_fallthru
              _
            // Predicated region
            $region53: #{yolov8_detector_forward.1} parent=47 // pred_check
              _
            $region54: #{yolov8_detector_forward.1} parent=47 // pred_check_branch
              %328 = sbr.rel target = $region56
            $region55: #{yolov8_detector_forward.1} parent=47 // pred_region
              %s330 = ssub.s32 256, 1
              loop: start=0, step=1, limit=1
              $region57: #{yolov8_detector_forward.1} parent=55 // loop_pre_header
                _
              $region58: #{yolov8_detector_forward.1} parent=55 // loop_header
                %s332 = sphi 0, %s336
                %p333 = scmp.ge.s32.totalorder %s332, 1
                %s337 = sphi %s322, %s322
                %s338 = sphi %s319, %s319
              $region59: #{yolov8_detector_forward.1} parent=55 // loop_header_branch
                %335 = sbr.rel (%p333) target = $region63
              $region60: #{yolov8_detector_forward.1} parent=55 // loop_body
                %v339 = vld [vmem:[%s337] sm:%s330]
                %340 = vst [vmem:[%s338] sm:%s330] %v339
                %v341 = vld [vmem:[%s337 + $0x10] sm:%s330]
                %342 = vst [vmem:[%s338 + $0x8] sm:%s330] %v341
                %v343 = vld [vmem:[%s337 + $0x20] sm:%s330]
                %344 = vst [vmem:[%s338 + $0x10] sm:%s330] %v343
                %v345 = vld [vmem:[%s337 + $0x30] sm:%s330]
                %346 = vst [vmem:[%s338 + $0x18] sm:%s330] %v345
                %v347 = vld [vmem:[%s337 + $0x40] sm:%s330]
                %348 = vst [vmem:[%s338 + $0x20] sm:%s330] %v347
                %v349 = vld [vmem:[%s337 + $0x50] sm:%s330]
                %350 = vst [vmem:[%s338 + $0x28] sm:%s330] %v349
                %v351 = vld [vmem:[%s337 + $0x60] sm:%s330]
                %352 = vst [vmem:[%s338 + $0x30] sm:%s330] %v351
                %v353 = vld [vmem:[%s337 + $0x70] sm:%s330]
                %354 = vst [vmem:[%s338 + $0x38] sm:%s330] %v353
                %v355 = vld [vmem:[%s337 + $0x80] sm:%s330]
                %356 = vst [vmem:[%s338 + $0x40] sm:%s330] %v355
                %v357 = vld [vmem:[%s337 + $0x90] sm:%s330]
                %358 = vst [vmem:[%s338 + $0x48] sm:%s330] %v357
                %v359 = vld [vmem:[%s337 + $0xa0] sm:%s330]
                %360 = vst [vmem:[%s338 + $0x50] sm:%s330] %v359
                %v361 = vld [vmem:[%s337 + $0xb0] sm:%s330]
                %362 = vst [vmem:[%s338 + $0x58] sm:%s330] %v361
                %v363 = vld [vmem:[%s337 + $0xc0] sm:%s330]
                %364 = vst [vmem:[%s338 + $0x60] sm:%s330] %v363
                %v365 = vld [vmem:[%s337 + $0xd0] sm:%s330]
                %366 = vst [vmem:[%s338 + $0x68] sm:%s330] %v365
                %v367 = vld [vmem:[%s337 + $0xe0] sm:%s330]
                %368 = vst [vmem:[%s338 + $0x70] sm:%s330] %v367
                %v369 = vld [vmem:[%s337 + $0xf0] sm:%s330]
                %370 = vst [vmem:[%s338 + $0x78] sm:%s330] %v369
                %v371 = vld [vmem:[%s337 + $0x100] sm:%s330]
                %372 = vst [vmem:[%s338 + $0x80] sm:%s330] %v371
                %v373 = vld [vmem:[%s337 + $0x110] sm:%s330]
                %374 = vst [vmem:[%s338 + $0x88] sm:%s330] %v373
                %v375 = vld [vmem:[%s337 + $0x120] sm:%s330]
                %376 = vst [vmem:[%s338 + $0x90] sm:%s330] %v375
              $region61: #{yolov8_detector_forward.1} parent=55 // loop_footer
                %s336 = sadd.s32 1, %s332
              $region62: #{yolov8_detector_forward.1} parent=55 // loop_footer_branch
                %331 = sbr.rel target = $region58
              $region63: #{yolov8_detector_forward.1} parent=55 // loop_exit
                _
            $region56: #{yolov8_detector_forward.1} parent=47 // pred_fallthru
              _
          $region48: #{yolov8_detector_forward.1} parent=43 // pred_fallthru
            _
          %427 = vnop
        $region44: #{yolov8_detector_forward.1} parent=39 // pred_fallthru
          _
        // Predicated region
        $region79: #{yolov8_detector_forward.1} parent=39 // pred_check
          %p428 = pneg %p66
        $region80: #{yolov8_detector_forward.1} parent=39 // pred_check_branch
          %430 = sbr.rel (%p428) target = $region82
        $region81: #{yolov8_detector_forward.1} parent=39 // pred_region
          %s431 = smul.u32 2, %s20
          %p432 = scmp.lt.s32.totalorder %s431, 3
          %s433 = scalar_select %p432, %s431, 3
          %s434 = smul.addr %s433, 2
          %s435 = scalar_lea.vmem %s1, %s434
          %s436 = smul.u32 2, %s20
        $region82: #{yolov8_detector_forward.1} parent=39 // pred_fallthru
          _
      $region40: #{yolov8_detector_forward.1} parent=5 // pred_fallthru
        _
      %p437 = scmp.le.s32.totalorder 1, %s20
      %p438 = scmp.lt.s32.totalorder %s20, 3
      %p439 = pnand %p437, %p438
      %p440 = pneg %p439
      // Predicated region
      $region83: #{yolov8_detector_forward.1} parent=5 // pred_check
        _
      $region84: #{yolov8_detector_forward.1} parent=5 // pred_check_branch
        %442 = sbr.rel (%p439) target = $region86
      $region85: #{yolov8_detector_forward.1} parent=5 // pred_region
        %s443 = ssub.s32 %s20, 1
        %s444 = sand.u32 %s33, 1
        %s445 = sand.u32 %s33, 1
        %s446 = smul.addr %s445, 152
        %s447 = scalar_lea.vmem [#allocation2], %s446
        // Predicated region
        $region87: #{yolov8_detector_forward.1} parent=85 // pred_check
          %p448 = pneg %p46
        $region88: #{yolov8_detector_forward.1} parent=85 // pred_check_branch
          %450 = sbr.rel (%p448) target = $region90
        $region89: #{yolov8_detector_forward.1} parent=85 // pred_region
          _
        $region90: #{yolov8_detector_forward.1} parent=85 // pred_fallthru
          _
        %s451 = sand.u32 %s33, 1
        %s452 = sand.u32 %s33, 1
        %s453 = smul.addr %s452, 152
        %s454 = scalar_lea.vmem [#allocation2], %s453
        %p455 = pneg %p46
        %p456 = pneg %p43
        %s457 = smul.u32 2, %s25
        %p458 = scmp.lt.s32.totalorder %s457, 3
        %s459 = scalar_select %p458, %s457, 3
        %s460 = smul.addr %s459, 2
        %s461 = scalar_lea.vmem %s1, %s460
        %p462 = pneg %p72
        %p463 = pneg %p69
        %p464 = pneg %p93
        %p465 = pneg %p90
        %p466 = pneg %p114
        %p467 = pneg %p111
        %p468 = pneg %p135
        %p469 = pneg %p132
        %p470 = pneg %p156
        %p471 = pneg %p153
        %p472 = pneg %p177
        %p473 = pneg %p174
        %p474 = pneg %p198
        %p475 = pneg %p195
        %p476 = pneg %p224
        %p477 = pneg %p221
        %s478 = sand.u32 %s211, 1
        %s479 = scalar_lea.sflag [#allocation4], %s478
        %s480 = sand.u32 %s211, 1
        %s481 = smul.addr %s480, 8
        %s482 = scalar_lea.vmem [#allocation3], %s481
        %p483 = pneg %p250
        %p484 = pneg %p247
        %s485 = smul.u32 2, %s25
        %p486 = scmp.lt.s32.totalorder %s485, 3
        %s487 = scalar_select %p486, %s485, 3
        %s488 = scalar_lea.vmem %s9, %s487
        %p489 = pneg %p276
        %p490 = pneg %p273
        %s491 = smul.u32 2, %s25
        %p492 = scmp.lt.s32.totalorder %s491, 3
        %s493 = scalar_select %p492, %s491, 3
        %s494 = scalar_lea.vmem %s10, %s493
        %s495 = smul.u32 2, %s25
        %s496 = smul.u32 2, %s25
        %p497 = scmp.lt.s32.totalorder %s496, 3
        %s498 = scalar_select %p497, %s496, 3
        %s499 = smul.addr %s498, 2
        %s500 = scalar_lea.vmem %s1, %s499
        %s501 = smul.u32 2, %s25
        %s502 = smul.u32 2, %s25
        %s503 = smul.u32 2, %s25
        %p504 = scmp.lt.s32.totalorder %s503, 3
        %s505 = scalar_select %p504, %s503, 3
        %s506 = scalar_lea.vmem %s9, %s505
        %s507 = smul.u32 2, %s25
        %s508 = smul.u32 2, %s25
        %p509 = scmp.lt.s32.totalorder %s508, 3
        %s510 = scalar_select %p509, %s508, 3
        %s511 = scalar_lea.vmem %s10, %s510
        %s512 = smul.u32 2, %s25
        %v514 = vld [vmem:[%s2] sm:$0xff]
        %v515 = vld [vmem:[%s2 + $0x8] sm:$0xff]
        %v516 = vld [vmem:[%s2 + $0x10] sm:$0xff]
        %v517 = vld [vmem:[%s2 + $0x18] sm:$0xff]
        %v518 = vld [vmem:[%s2 + $0x20] sm:$0xff]
        %v519 = vld [vmem:[%s2 + $0x28] sm:$0xff]
        %v520 = vld [vmem:[%s2 + $0x30] sm:$0xff]
        %v521 = vld [vmem:[%s2 + $0x38] sm:$0xff]
        %v522 = vld [vmem:[%s2 + $0x40] sm:$0xff]
        %v523 = vld [vmem:[%s447] sm:$0xff]
        %v524 = vld [vmem:[%s447 + $0x8] sm:$0xff]
        %v525 = vld [vmem:[%s447 + $0x10] sm:$0xff]
        %v526 = vld [vmem:[%s447 + $0x18] sm:$0xff]
        %v527 = vld [vmem:[%s447 + $0x20] sm:$0xff]
        %v528 = vld [vmem:[%s447 + $0x28] sm:$0xff]
        %v529 = vld [vmem:[%s447 + $0x30] sm:$0xff]
        %v530 = vld [vmem:[%s447 + $0x38] sm:$0xff]
        %v531 = vld [vmem:[%s447 + $0x40] sm:$0xff]
        %v532 = vld [vmem:[%s447 + $0x48] sm:$0xff]
        %v533 = vld [vmem:[%s447 + $0x50] sm:$0xff]
        %v534 = vld [vmem:[%s447 + $0x58] sm:$0xff]
        %v535 = vld [vmem:[%s447 + $0x60] sm:$0xff]
        %v536 = vld [vmem:[%s447 + $0x68] sm:$0xff]
        %v537 = vld [vmem:[%s447 + $0x70] sm:$0xff]
        %v538 = vld [vmem:[%s447 + $0x78] sm:$0xff]
        %v539 = vld [vmem:[%s447 + $0x80] sm:$0xff]
        %v540 = vld [vmem:[%s447 + $0x88] sm:$0xff]
        %v541 = vld [vmem:[%s447 + $0x90] sm:$0x33]
        %v542 = vld [vmem:[%s3] sm:$0xff]
        %v543 = vld [vmem:[%s3 + $0x8] sm:$0xff]
        %v544 = vld [vmem:[%s3 + $0x10] sm:$0xff]
        %v545 = vld [vmem:[%s3 + $0x18] sm:$0xff]
        %v546 = vld [vmem:[%s3 + $0x20] sm:$0xff]
        %v547 = vld [vmem:[%s3 + $0x28] sm:$0xff]
        %v548 = vld [vmem:[%s3 + $0x30] sm:$0xff]
        %v549 = vld [vmem:[%s3 + $0x38] sm:$0xff]
        %v550 = vld [vmem:[%s3 + $0x40] sm:$0xff]
        %552 = vset.pattern.permute.xlu0 0
        %553 = vperm.xlu0 %552, %v542
        %v554 = vpop.permute.xlu0 %553
        %557 = vset.pattern.permute.xlu0 0
        %558 = vperm.xlu0 %557, %v543
        %v559 = vpop.permute.xlu0 %558
        %562 = vset.pattern.permute.xlu0 0
        %563 = vperm.xlu0 %562, %v544
        %v564 = vpop.permute.xlu0 %563
        %567 = vset.pattern.permute.xlu0 0
        %568 = vperm.xlu0 %567, %v545
        %v569 = vpop.permute.xlu0 %568
        %572 = vset.pattern.permute.xlu0 0
        %573 = vperm.xlu0 %572, %v546
        %v574 = vpop.permute.xlu0 %573
        %577 = vset.pattern.permute.xlu0 0
        %578 = vperm.xlu0 %577, %v547
        %v579 = vpop.permute.xlu0 %578
        %582 = vset.pattern.permute.xlu0 0
        %583 = vperm.xlu0 %582, %v548
        %v584 = vpop.permute.xlu0 %583
        %587 = vset.pattern.permute.xlu0 0
        %588 = vperm.xlu0 %587, %v549
        %v589 = vpop.permute.xlu0 %588
        %592 = vset.pattern.permute.xlu0 0
        %593 = vperm.xlu0 %592, %v550
        %v594 = vpop.permute.xlu0 %593
        %v605 = vunpack.c.l.b16 %v514
        %v606 = vunpack.c.h.b16 %v514
        %v607 = vunpack.c.l.b16 %v515
        %v608 = vunpack.c.h.b16 %v515
        %v609 = vunpack.c.l.b16 %v516
        %v610 = vunpack.c.h.b16 %v516
        %v611 = vunpack.c.l.b16 %v517
        %v612 = vunpack.c.h.b16 %v517
        %v613 = vunpack.c.l.b16 %v518
        %v614 = vunpack.c.h.b16 %v518
        %v615 = vunpack.c.l.b16 %v519
        %v616 = vunpack.c.h.b16 %v519
        %v617 = vunpack.c.l.b16 %v520
        %v618 = vunpack.c.h.b16 %v520
        %v619 = vunpack.c.l.b16 %v521
        %v620 = vunpack.c.h.b16 %v521
        %v621 = vunpack.c.l.b16 %v522
        %v622 = vunpack.c.h.b16 %v522
        %v623 = vpack.c.b16 %v607, %v605
        %v624 = vpack.c.b16 %v608, %v606
        %v625 = vpack.c.b16 %v611, %v609
        %v626 = vpack.c.b16 %v612, %v610
        %v627 = vpack.c.b16 %v615, %v613
        %v628 = vpack.c.b16 %v616, %v614
        %v629 = vpack.c.b16 %v619, %v617
        %v630 = vpack.c.b16 %v620, %v618
        %v631 = vpack.c.b16 %v621, %v621
        %v632 = vpack.c.b16 %v622, %v622
        %v657 = vunpack.c.l.b16 %v523
        %v658 = vunpack.c.h.b16 %v523
        %v659 = vunpack.c.l.b16 %v524
        %v660 = vunpack.c.h.b16 %v524
        %v661 = vunpack.c.l.b16 %v525
        %v662 = vunpack.c.h.b16 %v525
        %v663 = vunpack.c.l.b16 %v526
        %v664 = vunpack.c.h.b16 %v526
        %v665 = vunpack.c.l.b16 %v527
        %v666 = vunpack.c.h.b16 %v527
        %v667 = vunpack.c.l.b16 %v528
        %v668 = vunpack.c.h.b16 %v528
        %v669 = vunpack.c.l.b16 %v529
        %v670 = vunpack.c.h.b16 %v529
        %v671 = vunpack.c.l.b16 %v530
        %v672 = vunpack.c.h.b16 %v530
        %v673 = vunpack.c.l.b16 %v531
        %v674 = vunpack.c.h.b16 %v531
        %v675 = vunpack.c.l.b16 %v532
        %v676 = vunpack.c.h.b16 %v532
        %v677 = vunpack.c.l.b16 %v533
        %v678 = vunpack.c.h.b16 %v533
        %v679 = vunpack.c.l.b16 %v534
        %v680 = vunpack.c.h.b16 %v534
        %v681 = vunpack.c.l.b16 %v535
        %v682 = vunpack.c.h.b16 %v535
        %v683 = vunpack.c.l.b16 %v536
        %v684 = vunpack.c.h.b16 %v536
        %v685 = vunpack.c.l.b16 %v537
        %v686 = vunpack.c.h.b16 %v537
        %v687 = vunpack.c.l.b16 %v538
        %v688 = vunpack.c.h.b16 %v538
        %v689 = vunpack.c.l.b16 %v539
        %v690 = vunpack.c.h.b16 %v539
        %v691 = vunpack.c.l.b16 %v540
        %v692 = vunpack.c.h.b16 %v540
        %v693 = vunpack.c.l.b16 %v541
        %v694 = vunpack.c.h.b16 %v541
        %v695 = vpack.c.b16 %v659, %v657
        %v696 = vpack.c.b16 %v660, %v658
        %v697 = vpack.c.b16 %v663, %v661
        %v698 = vpack.c.b16 %v664, %v662
        %v699 = vpack.c.b16 %v667, %v665
        %v700 = vpack.c.b16 %v668, %v666
        %v701 = vpack.c.b16 %v671, %v669
        %v702 = vpack.c.b16 %v672, %v670
        %v703 = vpack.c.b16 %v675, %v673
        %v704 = vpack.c.b16 %v676, %v674
        %v705 = vpack.c.b16 %v679, %v677
        %v706 = vpack.c.b16 %v680, %v678
        %v707 = vpack.c.b16 %v683, %v681
        %v708 = vpack.c.b16 %v684, %v682
        %v709 = vpack.c.b16 %v687, %v685
        %v710 = vpack.c.b16 %v688, %v686
        %v711 = vpack.c.b16 %v691, %v689
        %v712 = vpack.c.b16 %v692, %v690
        %v713 = vpack.c.b16 %v693, %v693
        %v714 = vpack.c.b16 %v694, %v694
        %vm733 = vcmask 154624
        %v735 = vsel %vm733, %v624, 0
        %v738 = vsel %vm733, %v626, 0
        %v741 = vsel %vm733, %v628, 0
        %v744 = vsel %vm733, %v630, 0
        %v747 = vsel %vm733, %v632, 0
        %vm749 = vcmask 1040384
        %vm750 = vcmask 1041408
        %v751 = vsel %vm749, 4294967295, 65535
        %v752 = vsel %vm750, %v751, 0
        %v754 = vand.u32 %v713, %v752
        %v757 = vand.u32 %v714, %v752
        %759 = vmatpush.bf16.msra.mxu0 %v709
        %760 = vmatpush.bf16.msra.mxu0 %v707
        %761 = vmatpush.bf16.msra.mxu0 %v705
        %762 = vmatpush.bf16.msra.mxu0 %v703
        %763 = vmatpush.bf16.msra.mxu0 %v701
        %764 = vmatpush.bf16.msra.mxu0 %v699
        %765 = vmatpush.bf16.msra.mxu0 %v697
        %766 = vmatpush.bf16.msra.mxu0 %v695
        %767 = vmatmul.bf16.gmra.mxu0 %v623
        %v768 = vpop.f32.mrf.mxu0
        %v769 = vadd.f32 %v554, %v768
        %v770 = vpop.f32.mrf.mxu0
        %v771 = vadd.f32 %v559, %v770
        %772 = vmatmul.bf16.gmra.mxu0 %v625
        %v773 = vpop.f32.mrf.mxu0
        %v774 = vadd.f32 %v564, %v773
        %v775 = vpop.f32.mrf.mxu0
        %v776 = vadd.f32 %v569, %v775
        %777 = vmatmul.bf16.gmra.mxu0 %v627
        %v778 = vpop.f32.mrf.mxu0
        %v779 = vadd.f32 %v574, %v778
        %v780 = vpop.f32.mrf.mxu0
        %v781 = vadd.f32 %v579, %v780
        %782 = vmatmul.bf16.gmra.mxu0 %v629
        %v783 = vpop.f32.mrf.mxu0
        %v784 = vadd.f32 %v584, %v783
        %v785 = vpop.f32.mrf.mxu0
        %v786 = vadd.f32 %v589, %v785
        %787 = vmatmul.bf16.gmra.mxu0 %v631
        %v788 = vpop.f32.mrf.mxu0
        %v789 = vadd.f32 %v594, %v788
        %v790 = vpop.f32.mrf.mxu0
        %791 = vdwg.mxu0
        %792 = vmatpush.bf16.msra.mxu0 0
        %793 = vmatpush.bf16.msra.mxu0 0
        %794 = vmatpush.bf16.msra.mxu0 0
        %795 = vmatpush.bf16.msra.mxu0 0
        %796 = vmatpush.bf16.msra.mxu0 0
        %797 = vmatpush.bf16.msra.mxu0 0
        %798 = vmatpush.bf16.msra.mxu0 %v754
        %799 = vmatpush.bf16.msra.mxu0 %v711
        %800 = vmatmul.bf16.gmra.mxu0 %v735
        %v801 = vpop.f32.mrf.mxu0
        %v802 = vadd.f32 %v769, %v801
        %v803 = vpop.f32.mrf.mxu0
        %v804 = vadd.f32 %v771, %v803
        %805 = vmatmul.bf16.gmra.mxu0 %v738
        %v806 = vpop.f32.mrf.mxu0
        %v807 = vadd.f32 %v774, %v806
        %v808 = vpop.f32.mrf.mxu0
        %v809 = vadd.f32 %v776, %v808
        %810 = vmatmul.bf16.gmra.mxu0 %v741
        %v811 = vpop.f32.mrf.mxu0
        %v812 = vadd.f32 %v779, %v811
        %v813 = vpop.f32.mrf.mxu0
        %v814 = vadd.f32 %v781, %v813
        %815 = vmatmul.bf16.gmra.mxu0 %v744
        %v816 = vpop.f32.mrf.mxu0
        %v817 = vadd.f32 %v784, %v816
        %v818 = vpop.f32.mrf.mxu0
        %v819 = vadd.f32 %v786, %v818
        %820 = vmatmul.bf16.gmra.mxu0 %v747
        %v821 = vpop.f32.mrf.mxu0
        %v822 = vadd.f32 %v789, %v821
        %v823 = vpop.f32.mrf.mxu0
        %824 = vdwg.mxu0
        %825 = vmatpush.bf16.msra.mxu0 %v710
        %826 = vmatpush.bf16.msra.mxu0 %v708
        %827 = vmatpush.bf16.msra.mxu0 %v706
        %828 = vmatpush.bf16.msra.mxu0 %v704
        %829 = vmatpush.bf16.msra.mxu0 %v702
        %830 = vmatpush.bf16.msra.mxu0 %v700
        %831 = vmatpush.bf16.msra.mxu0 %v698
        %832 = vmatpush.bf16.msra.mxu0 %v696
        %833 = vmatmul.bf16.gmra.mxu0 %v623
        %v834 = vpop.f32.mrf.mxu0
        %v835 = vadd.f32 %v554, %v834
        %v836 = vpop.f32.mrf.mxu0
        %v837 = vadd.f32 %v559, %v836
        %838 = vmatmul.bf16.gmra.mxu0 %v625
        %v839 = vpop.f32.mrf.mxu0
        %v840 = vadd.f32 %v564, %v839
        %v841 = vpop.f32.mrf.mxu0
        %v842 = vadd.f32 %v569, %v841
        %843 = vmatmul.bf16.gmra.mxu0 %v627
        %v844 = vpop.f32.mrf.mxu0
        %v845 = vadd.f32 %v574, %v844
        %v846 = vpop.f32.mrf.mxu0
        %v847 = vadd.f32 %v579, %v846
        %848 = vmatmul.bf16.gmra.mxu0 %v629
        %v849 = vpop.f32.mrf.mxu0
        %v850 = vadd.f32 %v584, %v849
        %v851 = vpop.f32.mrf.mxu0
        %v852 = vadd.f32 %v589, %v851
        %853 = vmatmul.bf16.gmra.mxu0 %v631
        %v854 = vpop.f32.mrf.mxu0
        %v855 = vadd.f32 %v594, %v854
        %v856 = vpop.f32.mrf.mxu0
        %857 = vdwg.mxu0
        %858 = vmatpush.bf16.msra.mxu0 0
        %859 = vmatpush.bf16.msra.mxu0 0
        %860 = vmatpush.bf16.msra.mxu0 0
        %861 = vmatpush.bf16.msra.mxu0 0
        %862 = vmatpush.bf16.msra.mxu0 0
        %863 = vmatpush.bf16.msra.mxu0 0
        %864 = vmatpush.bf16.msra.mxu0 %v757
        %865 = vmatpush.bf16.msra.mxu0 %v712
        %866 = vmatmul.bf16.gmra.mxu0 %v735
        %v867 = vpop.f32.mrf.mxu0
        %v868 = vadd.f32 %v835, %v867
        %v869 = vpop.f32.mrf.mxu0
        %v870 = vadd.f32 %v837, %v869
        %871 = vmatmul.bf16.gmra.mxu0 %v738
        %v872 = vpop.f32.mrf.mxu0
        %v873 = vadd.f32 %v840, %v872
        %v874 = vpop.f32.mrf.mxu0
        %v875 = vadd.f32 %v842, %v874
        %876 = vmatmul.bf16.gmra.mxu0 %v741
        %v877 = vpop.f32.mrf.mxu0
        %v878 = vadd.f32 %v845, %v877
        %v879 = vpop.f32.mrf.mxu0
        %v880 = vadd.f32 %v847, %v879
        %881 = vmatmul.bf16.gmra.mxu0 %v744
        %v882 = vpop.f32.mrf.mxu0
        %v883 = vadd.f32 %v850, %v882
        %v884 = vpop.f32.mrf.mxu0
        %v885 = vadd.f32 %v852, %v884
        %886 = vmatmul.bf16.gmra.mxu0 %v747
        %v887 = vpop.f32.mrf.mxu0
        %v888 = vadd.f32 %v855, %v887
        %v889 = vpop.f32.mrf.mxu0
        %890 = vdwg.mxu0
        %v891 = vxor.u32 %v802, 2147483648
        %v892 = vxor.u32 %v868, 2147483648
        %v893 = vxor.u32 %v804, 2147483648
        %v894 = vxor.u32 %v870, 2147483648
        %v895 = vxor.u32 %v807, 2147483648
        %v896 = vxor.u32 %v873, 2147483648
        %v897 = vxor.u32 %v809, 2147483648
        %v898 = vxor.u32 %v875, 2147483648
        %v899 = vxor.u32 %v812, 2147483648
        %v900 = vxor.u32 %v878, 2147483648
        %v901 = vxor.u32 %v814, 2147483648
        %v902 = vxor.u32 %v880, 2147483648
        %v903 = vxor.u32 %v817, 2147483648
        %v904 = vxor.u32 %v883, 2147483648
        %v905 = vxor.u32 %v819, 2147483648
        %v906 = vxor.u32 %v885, 2147483648
        %v907 = vxor.u32 %v822, 2147483648
        %v908 = vxor.u32 %v888, 2147483648
        %v909 = vmul.f32 %v891, 1.442695
        %v910 = vpow.pop %v909
        %v911 = vmul.f32 %v892, 1.442695
        %v912 = vpow.pop %v911
        %v913 = vmul.f32 %v893, 1.442695
        %v914 = vpow.pop %v913
        %v915 = vmul.f32 %v894, 1.442695
        %v916 = vpow.pop %v915
        %v917 = vmul.f32 %v895, 1.442695
        %v918 = vpow.pop %v917
        %v919 = vmul.f32 %v896, 1.442695
        %v920 = vpow.pop %v919
        %v921 = vmul.f32 %v897, 1.442695
        %v922 = vpow.pop %v921
        %v923 = vmul.f32 %v898, 1.442695
        %v924 = vpow.pop %v923
        %v925 = vmul.f32 %v899, 1.442695
        %v926 = vpow.pop %v925
        %v927 = vmul.f32 %v900, 1.442695
        %v928 = vpow.pop %v927
        %v929 = vmul.f32 %v901, 1.442695
        %v930 = vpow.pop %v929
        %v931 = vmul.f32 %v902, 1.442695
        %v932 = vpow.pop %v931
        %v933 = vmul.f32 %v903, 1.442695
        %v934 = vpow.pop %v933
        %v935 = vmul.f32 %v904, 1.442695
        %v936 = vpow.pop %v935
        %v937 = vmul.f32 %v905, 1.442695
        %v938 = vpow.pop %v937
        %v939 = vmul.f32 %v906, 1.442695
        %v940 = vpow.pop %v939
        %v941 = vmul.f32 %v907, 1.442695
        %v942 = vpow.pop %v941
        %v943 = vmul.f32 %v908, 1.442695
        %v944 = vpow.pop %v943
        %v945 = vadd.f32 %v910, 1.0
        %v946 = vadd.f32 %v912, 1.0
        %v947 = vadd.f32 %v914, 1.0
        %v948 = vadd.f32 %v916, 1.0
        %v949 = vadd.f32 %v918, 1.0
        %v950 = vadd.f32 %v920, 1.0
        %v951 = vadd.f32 %v922, 1.0
        %v952 = vadd.f32 %v924, 1.0
        %v953 = vadd.f32 %v926, 1.0
        %v954 = vadd.f32 %v928, 1.0
        %v955 = vadd.f32 %v930, 1.0
        %v956 = vadd.f32 %v932, 1.0
        %v957 = vadd.f32 %v934, 1.0
        %v958 = vadd.f32 %v936, 1.0
        %v959 = vadd.f32 %v938, 1.0
        %v960 = vadd.f32 %v940, 1.0
        %v961 = vadd.f32 %v942, 1.0
        %v962 = vadd.f32 %v944, 1.0
        %v963 = vrcp.pop %v945
        %v964 = vmul.f32 %v945, %v963
        %v965 = vsub.f32 1.0, %v964
        %v966 = vmul.f32 %v963, %v965
        %v967 = vadd.f32 %v963, %v966
        %vm968 = vweird.f32 %v945
        %vm969 = vweird.f32 %v963
        %vm970 = vmor %vm968, %vm969
        %v971 = vsel %vm970, %v963, %v967
        %v972 = vand.u32 2147483647, %v945
        %vm973 = vcmp.eq.f32.partialorder %v972, 8.507059e+37
        %v974 = vand.u32 %v945, 2147483648
        %v975 = vor.u32 1.1754944e-38, %v974
        %v976 = vsel %vm973, %v975, %v971
        %v977 = vmul.f32 1.0, %v976
        %v978 = vrcp.pop %v946
        %v979 = vmul.f32 %v946, %v978
        %v980 = vsub.f32 1.0, %v979
        %v981 = vmul.f32 %v978, %v980
        %v982 = vadd.f32 %v978, %v981
        %vm983 = vweird.f32 %v946
        %vm984 = vweird.f32 %v978
        %vm985 = vmor %vm983, %vm984
        %v986 = vsel %vm985, %v978, %v982
        %v987 = vand.u32 2147483647, %v946
        %vm988 = vcmp.eq.f32.partialorder %v987, 8.507059e+37
        %v989 = vand.u32 %v946, 2147483648
        %v990 = vor.u32 1.1754944e-38, %v989
        %v991 = vsel %vm988, %v990, %v986
        %v992 = vmul.f32 1.0, %v991
        %v993 = vrcp.pop %v947
        %v994 = vmul.f32 %v947, %v993
        %v995 = vsub.f32 1.0, %v994
        %v996 = vmul.f32 %v993, %v995
        %v997 = vadd.f32 %v993, %v996
        %vm998 = vweird.f32 %v947
        %vm999 = vweird.f32 %v993
        %vm1000 = vmor %vm998, %vm999
        %v1001 = vsel %vm1000, %v993, %v997
        %v1002 = vand.u32 2147483647, %v947
        %vm1003 = vcmp.eq.f32.partialorder %v1002, 8.507059e+37
        %v1004 = vand.u32 %v947, 2147483648
        %v1005 = vor.u32 1.1754944e-38, %v1004
        %v1006 = vsel %vm1003, %v1005, %v1001
        %v1007 = vmul.f32 1.0, %v1006
        %v1008 = vrcp.pop %v948
        %v1009 = vmul.f32 %v948, %v1008
        %v1010 = vsub.f32 1.0, %v1009
        %v1011 = vmul.f32 %v1008, %v1010
        %v1012 = vadd.f32 %v1008, %v1011
        %vm1013 = vweird.f32 %v948
        %vm1014 = vweird.f32 %v1008
        %vm1015 = vmor %vm1013, %vm1014
        %v1016 = vsel %vm1015, %v1008, %v1012
        %v1017 = vand.u32 2147483647, %v948
        %vm1018 = vcmp.eq.f32.partialorder %v1017, 8.507059e+37
        %v1019 = vand.u32 %v948, 2147483648
        %v1020 = vor.u32 1.1754944e-38, %v1019
        %v1021 = vsel %vm1018, %v1020, %v1016
        %v1022 = vmul.f32 1.0, %v1021
        %v1023 = vrcp.pop %v949
        %v1024 = vmul.f32 %v949, %v1023
        %v1025 = vsub.f32 1.0, %v1024
        %v1026 = vmul.f32 %v1023, %v1025
        %v1027 = vadd.f32 %v1023, %v1026
        %vm1028 = vweird.f32 %v949
        %vm1029 = vweird.f32 %v1023
        %vm1030 = vmor %vm1028, %vm1029
        %v1031 = vsel %vm1030, %v1023, %v1027
        %v1032 = vand.u32 2147483647, %v949
        %vm1033 = vcmp.eq.f32.partialorder %v1032, 8.507059e+37
        %v1034 = vand.u32 %v949, 2147483648
        %v1035 = vor.u32 1.1754944e-38, %v1034
        %v1036 = vsel %vm1033, %v1035, %v1031
        %v1037 = vmul.f32 1.0, %v1036
        %v1038 = vrcp.pop %v950
        %v1039 = vmul.f32 %v950, %v1038
        %v1040 = vsub.f32 1.0, %v1039
        %v1041 = vmul.f32 %v1038, %v1040
        %v1042 = vadd.f32 %v1038, %v1041
        %vm1043 = vweird.f32 %v950
        %vm1044 = vweird.f32 %v1038
        %vm1045 = vmor %vm1043, %vm1044
        %v1046 = vsel %vm1045, %v1038, %v1042
        %v1047 = vand.u32 2147483647, %v950
        %vm1048 = vcmp.eq.f32.partialorder %v1047, 8.507059e+37
        %v1049 = vand.u32 %v950, 2147483648
        %v1050 = vor.u32 1.1754944e-38, %v1049
        %v1051 = vsel %vm1048, %v1050, %v1046
        %v1052 = vmul.f32 1.0, %v1051
        %v1053 = vrcp.pop %v951
        %v1054 = vmul.f32 %v951, %v1053
        %v1055 = vsub.f32 1.0, %v1054
        %v1056 = vmul.f32 %v1053, %v1055
        %v1057 = vadd.f32 %v1053, %v1056
        %vm1058 = vweird.f32 %v951
        %vm1059 = vweird.f32 %v1053
        %vm1060 = vmor %vm1058, %vm1059
        %v1061 = vsel %vm1060, %v1053, %v1057
        %v1062 = vand.u32 2147483647, %v951
        %vm1063 = vcmp.eq.f32.partialorder %v1062, 8.507059e+37
        %v1064 = vand.u32 %v951, 2147483648
        %v1065 = vor.u32 1.1754944e-38, %v1064
        %v1066 = vsel %vm1063, %v1065, %v1061
        %v1067 = vmul.f32 1.0, %v1066
        %v1068 = vrcp.pop %v952
        %v1069 = vmul.f32 %v952, %v1068
        %v1070 = vsub.f32 1.0, %v1069
        %v1071 = vmul.f32 %v1068, %v1070
        %v1072 = vadd.f32 %v1068, %v1071
        %vm1073 = vweird.f32 %v952
        %vm1074 = vweird.f32 %v1068
        %vm1075 = vmor %vm1073, %vm1074
        %v1076 = vsel %vm1075, %v1068, %v1072
        %v1077 = vand.u32 2147483647, %v952
        %vm1078 = vcmp.eq.f32.partialorder %v1077, 8.507059e+37
        %v1079 = vand.u32 %v952, 2147483648
        %v1080 = vor.u32 1.1754944e-38, %v1079
        %v1081 = vsel %vm1078, %v1080, %v1076
        %v1082 = vmul.f32 1.0, %v1081
        %v1083 = vrcp.pop %v953
        %v1084 = vmul.f32 %v953, %v1083
        %v1085 = vsub.f32 1.0, %v1084
        %v1086 = vmul.f32 %v1083, %v1085
        %v1087 = vadd.f32 %v1083, %v1086
        %vm1088 = vweird.f32 %v953
        %vm1089 = vweird.f32 %v1083
        %vm1090 = vmor %vm1088, %vm1089
        %v1091 = vsel %vm1090, %v1083, %v1087
        %v1092 = vand.u32 2147483647, %v953
        %vm1093 = vcmp.eq.f32.partialorder %v1092, 8.507059e+37
        %v1094 = vand.u32 %v953, 2147483648
        %v1095 = vor.u32 1.1754944e-38, %v1094
        %v1096 = vsel %vm1093, %v1095, %v1091
        %v1097 = vmul.f32 1.0, %v1096
        %v1098 = vrcp.pop %v954
        %v1099 = vmul.f32 %v954, %v1098
        %v1100 = vsub.f32 1.0, %v1099
        %v1101 = vmul.f32 %v1098, %v1100
        %v1102 = vadd.f32 %v1098, %v1101
        %vm1103 = vweird.f32 %v954
        %vm1104 = vweird.f32 %v1098
        %vm1105 = vmor %vm1103, %vm1104
        %v1106 = vsel %vm1105, %v1098, %v1102
        %v1107 = vand.u32 2147483647, %v954
        %vm1108 = vcmp.eq.f32.partialorder %v1107, 8.507059e+37
        %v1109 = vand.u32 %v954, 2147483648
        %v1110 = vor.u32 1.1754944e-38, %v1109
        %v1111 = vsel %vm1108, %v1110, %v1106
        %v1112 = vmul.f32 1.0, %v1111
        %v1113 = vrcp.pop %v955
        %v1114 = vmul.f32 %v955, %v1113
        %v1115 = vsub.f32 1.0, %v1114
        %v1116 = vmul.f32 %v1113, %v1115
        %v1117 = vadd.f32 %v1113, %v1116
        %vm1118 = vweird.f32 %v955
        %vm1119 = vweird.f32 %v1113
        %vm1120 = vmor %vm1118, %vm1119
        %v1121 = vsel %vm1120, %v1113, %v1117
        %v1122 = vand.u32 2147483647, %v955
        %vm1123 = vcmp.eq.f32.partialorder %v1122, 8.507059e+37
        %v1124 = vand.u32 %v955, 2147483648
        %v1125 = vor.u32 1.1754944e-38, %v1124
        %v1126 = vsel %vm1123, %v1125, %v1121
        %v1127 = vmul.f32 1.0, %v1126
        %v1128 = vrcp.pop %v956
        %v1129 = vmul.f32 %v956, %v1128
        %v1130 = vsub.f32 1.0, %v1129
        %v1131 = vmul.f32 %v1128, %v1130
        %v1132 = vadd.f32 %v1128, %v1131
        %vm1133 = vweird.f32 %v956
        %vm1134 = vweird.f32 %v1128
        %vm1135 = vmor %vm1133, %vm1134
        %v1136 = vsel %vm1135, %v1128, %v1132
        %v1137 = vand.u32 2147483647, %v956
        %vm1138 = vcmp.eq.f32.partialorder %v1137, 8.507059e+37
        %v1139 = vand.u32 %v956, 2147483648
        %v1140 = vor.u32 1.1754944e-38, %v1139
        %v1141 = vsel %vm1138, %v1140, %v1136
        %v1142 = vmul.f32 1.0, %v1141
        %v1143 = vrcp.pop %v957
        %v1144 = vmul.f32 %v957, %v1143
        %v1145 = vsub.f32 1.0, %v1144
        %v1146 = vmul.f32 %v1143, %v1145
        %v1147 = vadd.f32 %v1143, %v1146
        %vm1148 = vweird.f32 %v957
        %vm1149 = vweird.f32 %v1143
        %vm1150 = vmor %vm1148, %vm1149
        %v1151 = vsel %vm1150, %v1143, %v1147
        %v1152 = vand.u32 2147483647, %v957
        %vm1153 = vcmp.eq.f32.partialorder %v1152, 8.507059e+37
        %v1154 = vand.u32 %v957, 2147483648
        %v1155 = vor.u32 1.1754944e-38, %v1154
        %v1156 = vsel %vm1153, %v1155, %v1151
        %v1157 = vmul.f32 1.0, %v1156
        %v1158 = vrcp.pop %v958
        %v1159 = vmul.f32 %v958, %v1158
        %v1160 = vsub.f32 1.0, %v1159
        %v1161 = vmul.f32 %v1158, %v1160
        %v1162 = vadd.f32 %v1158, %v1161
        %vm1163 = vweird.f32 %v958
        %vm1164 = vweird.f32 %v1158
        %vm1165 = vmor %vm1163, %vm1164
        %v1166 = vsel %vm1165, %v1158, %v1162
        %v1167 = vand.u32 2147483647, %v958
        %vm1168 = vcmp.eq.f32.partialorder %v1167, 8.507059e+37
        %v1169 = vand.u32 %v958, 2147483648
        %v1170 = vor.u32 1.1754944e-38, %v1169
        %v1171 = vsel %vm1168, %v1170, %v1166
        %v1172 = vmul.f32 1.0, %v1171
        %v1173 = vrcp.pop %v959
        %v1174 = vmul.f32 %v959, %v1173
        %v1175 = vsub.f32 1.0, %v1174
        %v1176 = vmul.f32 %v1173, %v1175
        %v1177 = vadd.f32 %v1173, %v1176
        %vm1178 = vweird.f32 %v959
        %vm1179 = vweird.f32 %v1173
        %vm1180 = vmor %vm1178, %vm1179
        %v1181 = vsel %vm1180, %v1173, %v1177
        %v1182 = vand.u32 2147483647, %v959
        %vm1183 = vcmp.eq.f32.partialorder %v1182, 8.507059e+37
        %v1184 = vand.u32 %v959, 2147483648
        %v1185 = vor.u32 1.1754944e-38, %v1184
        %v1186 = vsel %vm1183, %v1185, %v1181
        %v1187 = vmul.f32 1.0, %v1186
        %v1188 = vrcp.pop %v960
        %v1189 = vmul.f32 %v960, %v1188
        %v1190 = vsub.f32 1.0, %v1189
        %v1191 = vmul.f32 %v1188, %v1190
        %v1192 = vadd.f32 %v1188, %v1191
        %vm1193 = vweird.f32 %v960
        %vm1194 = vweird.f32 %v1188
        %vm1195 = vmor %vm1193, %vm1194
        %v1196 = vsel %vm1195, %v1188, %v1192
        %v1197 = vand.u32 2147483647, %v960
        %vm1198 = vcmp.eq.f32.partialorder %v1197, 8.507059e+37
        %v1199 = vand.u32 %v960, 2147483648
        %v1200 = vor.u32 1.1754944e-38, %v1199
        %v1201 = vsel %vm1198, %v1200, %v1196
        %v1202 = vmul.f32 1.0, %v1201
        %v1203 = vrcp.pop %v961
        %v1204 = vmul.f32 %v961, %v1203
        %v1205 = vsub.f32 1.0, %v1204
        %v1206 = vmul.f32 %v1203, %v1205
        %v1207 = vadd.f32 %v1203, %v1206
        %vm1208 = vweird.f32 %v961
        %vm1209 = vweird.f32 %v1203
        %vm1210 = vmor %vm1208, %vm1209
        %v1211 = vsel %vm1210, %v1203, %v1207
        %v1212 = vand.u32 2147483647, %v961
        %vm1213 = vcmp.eq.f32.partialorder %v1212, 8.507059e+37
        %v1214 = vand.u32 %v961, 2147483648
        %v1215 = vor.u32 1.1754944e-38, %v1214
        %v1216 = vsel %vm1213, %v1215, %v1211
        %v1217 = vmul.f32 1.0, %v1216
        %v1218 = vrcp.pop %v962
        %v1219 = vmul.f32 %v962, %v1218
        %v1220 = vsub.f32 1.0, %v1219
        %v1221 = vmul.f32 %v1218, %v1220
        %v1222 = vadd.f32 %v1218, %v1221
        %vm1223 = vweird.f32 %v962
        %vm1224 = vweird.f32 %v1218
        %vm1225 = vmor %vm1223, %vm1224
        %v1226 = vsel %vm1225, %v1218, %v1222
        %v1227 = vand.u32 2147483647, %v962
        %vm1228 = vcmp.eq.f32.partialorder %v1227, 8.507059e+37
        %v1229 = vand.u32 %v962, 2147483648
        %v1230 = vor.u32 1.1754944e-38, %v1229
        %v1231 = vsel %vm1228, %v1230, %v1226
        %v1232 = vmul.f32 1.0, %v1231
        %v1233 = vmul.f32 %v802, %v977
        %v1234 = vmul.f32 %v868, %v992
        %v1235 = vmul.f32 %v804, %v1007
        %v1236 = vmul.f32 %v870, %v1022
        %v1237 = vmul.f32 %v807, %v1037
        %v1238 = vmul.f32 %v873, %v1052
        %v1239 = vmul.f32 %v809, %v1067
        %v1240 = vmul.f32 %v875, %v1082
        %v1241 = vmul.f32 %v812, %v1097
        %v1242 = vmul.f32 %v878, %v1112
        %v1243 = vmul.f32 %v814, %v1127
        %v1244 = vmul.f32 %v880, %v1142
        %v1245 = vmul.f32 %v817, %v1157
        %v1246 = vmul.f32 %v883, %v1172
        %v1247 = vmul.f32 %v819, %v1187
        %v1248 = vmul.f32 %v885, %v1202
        %v1249 = vmul.f32 %v822, %v1217
        %v1250 = vmul.f32 %v888, %v1232
        %v1251 = vlaneseq
        %v1252 = vshrl.u32 %v1251, 7
        %v1253 = vadd.s32 %v1252, 8
        %v1254 = vadd.s32 %v1252, 16
        %v1255 = vadd.s32 %v1252, 24
        %v1256 = vadd.s32 %v1252, 32
        %v1257 = vadd.s32 %v1252, 40
        %v1258 = vadd.s32 %v1252, 48
        %v1259 = vadd.s32 %v1252, 56
        %v1260 = vadd.s32 %v1252, 64
        %vm1261 = vcmp.ge.s32.totalorder %v1252, 24
        %vm1262 = vcmp.ge.s32.totalorder %v1253, 24
        %vm1263 = vcmp.ge.s32.totalorder %v1254, 24
        %vm1264 = vcmp.ge.s32.totalorder %v1255, 24
        %vm1265 = vcmp.ge.s32.totalorder %v1256, 24
        %vm1266 = vcmp.ge.s32.totalorder %v1257, 24
        %vm1267 = vcmp.ge.s32.totalorder %v1258, 24
        %vm1268 = vcmp.ge.s32.totalorder %v1259, 24
        %vm1269 = vcmp.ge.s32.totalorder %v1260, 24
        %v1270 = vsel %vm1261, 1, 0
        %v1271 = vsel %vm1262, 1, 0
        %v1272 = vsel %vm1263, 1, 0
        %v1273 = vsel %vm1264, 1, 0
        %v1274 = vsel %vm1265, 1, 0
        %v1275 = vsel %vm1266, 1, 0
        %v1276 = vsel %vm1267, 1, 0
        %v1277 = vsel %vm1268, 1, 0
        %v1278 = vsel %vm1269, 1, 0
        %vm1279 = vcmp.ge.s32.totalorder %v1252, 48
        %vm1280 = vcmp.ge.s32.totalorder %v1253, 48
        %vm1281 = vcmp.ge.s32.totalorder %v1254, 48
        %vm1282 = vcmp.ge.s32.totalorder %v1255, 48
        %vm1283 = vcmp.ge.s32.totalorder %v1256, 48
        %vm1284 = vcmp.ge.s32.totalorder %v1257, 48
        %vm1285 = vcmp.ge.s32.totalorder %v1258, 48
        %vm1286 = vcmp.ge.s32.totalorder %v1259, 48
        %vm1287 = vcmp.ge.s32.totalorder %v1260, 48
        %v1288 = vsel %vm1279, 1, 0
        %v1289 = vsel %vm1280, 1, 0
        %v1290 = vsel %vm1281, 1, 0
        %v1291 = vsel %vm1282, 1, 0
        %v1292 = vsel %vm1283, 1, 0
        %v1293 = vsel %vm1284, 1, 0
        %v1294 = vsel %vm1285, 1, 0
        %v1295 = vsel %vm1286, 1, 0
        %v1296 = vsel %vm1287, 1, 0
        %v1297 = vadd.s32 %v1270, %v1288
        %v1298 = vadd.s32 %v1271, %v1289
        %v1299 = vadd.s32 %v1272, %v1290
        %v1300 = vadd.s32 %v1273, %v1291
        %v1301 = vadd.s32 %v1274, %v1292
        %v1302 = vadd.s32 %v1275, %v1293
        %v1303 = vadd.s32 %v1276, %v1294
        %v1304 = vadd.s32 %v1277, %v1295
        %v1305 = vadd.s32 %v1278, %v1296
        %v1306 = vmul.u32 %v1297, 24
        %v1307 = vmul.u32 %v1298, 24
        %v1308 = vmul.u32 %v1299, 24
        %v1309 = vmul.u32 %v1300, 24
        %v1310 = vmul.u32 %v1301, 24
        %v1311 = vmul.u32 %v1302, 24
        %v1312 = vmul.u32 %v1303, 24
        %v1313 = vmul.u32 %v1304, 24
        %v1314 = vmul.u32 %v1305, 24
        %v1315 = vsub.s32 %v1252, %v1306
        %v1316 = vsub.s32 %v1253, %v1307
        %v1317 = vsub.s32 %v1254, %v1308
        %v1318 = vsub.s32 %v1255, %v1309
        %v1319 = vsub.s32 %v1256, %v1310
        %v1320 = vsub.s32 %v1257, %v1311
        %v1321 = vsub.s32 %v1258, %v1312
        %v1322 = vsub.s32 %v1259, %v1313
        %v1323 = vsub.s32 %v1260, %v1314
        %vm1324 = vcmp.ge.s32.totalorder %v1315, 8
        %vm1325 = vcmp.ge.s32.totalorder %v1316, 8
        %vm1326 = vcmp.ge.s32.totalorder %v1317, 8
        %vm1327 = vcmp.ge.s32.totalorder %v1318, 8
        %vm1328 = vcmp.ge.s32.totalorder %v1319, 8
        %vm1329 = vcmp.ge.s32.totalorder %v1320, 8
        %vm1330 = vcmp.ge.s32.totalorder %v1321, 8
        %vm1331 = vcmp.ge.s32.totalorder %v1322, 8
        %vm1332 = vcmp.ge.s32.totalorder %v1323, 8
        %v1333 = vsel %vm1324, 1, 0
        %v1334 = vsel %vm1325, 1, 0
        %v1335 = vsel %vm1326, 1, 0
        %v1336 = vsel %vm1327, 1, 0
        %v1337 = vsel %vm1328, 1, 0
        %v1338 = vsel %vm1329, 1, 0
        %v1339 = vsel %vm1330, 1, 0
        %v1340 = vsel %vm1331, 1, 0
        %v1341 = vsel %vm1332, 1, 0
        %vm1342 = vcmp.ge.s32.totalorder %v1315, 16
        %vm1343 = vcmp.ge.s32.totalorder %v1316, 16
        %vm1344 = vcmp.ge.s32.totalorder %v1317, 16
        %vm1345 = vcmp.ge.s32.totalorder %v1318, 16
        %vm1346 = vcmp.ge.s32.totalorder %v1319, 16
        %vm1347 = vcmp.ge.s32.totalorder %v1320, 16
        %vm1348 = vcmp.ge.s32.totalorder %v1321, 16
        %vm1349 = vcmp.ge.s32.totalorder %v1322, 16
        %vm1350 = vcmp.ge.s32.totalorder %v1323, 16
        %v1351 = vsel %vm1342, 1, 0
        %v1352 = vsel %vm1343, 1, 0
        %v1353 = vsel %vm1344, 1, 0
        %v1354 = vsel %vm1345, 1, 0
        %v1355 = vsel %vm1346, 1, 0
        %v1356 = vsel %vm1347, 1, 0
        %v1357 = vsel %vm1348, 1, 0
        %v1358 = vsel %vm1349, 1, 0
        %v1359 = vsel %vm1350, 1, 0
        %v1360 = vadd.s32 %v1333, %v1351
        %v1361 = vadd.s32 %v1334, %v1352
        %v1362 = vadd.s32 %v1335, %v1353
        %v1363 = vadd.s32 %v1336, %v1354
        %v1364 = vadd.s32 %v1337, %v1355
        %v1365 = vadd.s32 %v1338, %v1356
        %v1366 = vadd.s32 %v1339, %v1357
        %v1367 = vadd.s32 %v1340, %v1358
        %v1368 = vadd.s32 %v1341, %v1359
        %v1369 = vld [vmem:[%s500] ss:$2 sm:$0x3]
        %v1370 = vmul.u32 %v1369, 2
        %v1371 = vperm.slane %v1370, 0
        %v1372 = vperm.slane %v1370, 1
        %v1373 = vadd.s32 %v1371, %v1297
        %v1374 = vadd.s32 %v1372, %v1297
        %v1375 = vadd.s32 %v1371, %v1298
        %v1376 = vadd.s32 %v1372, %v1298
        %v1377 = vadd.s32 %v1371, %v1299
        %v1378 = vadd.s32 %v1372, %v1299
        %v1379 = vadd.s32 %v1371, %v1300
        %v1380 = vadd.s32 %v1372, %v1300
        %v1381 = vadd.s32 %v1371, %v1301
        %v1382 = vadd.s32 %v1372, %v1301
        %v1383 = vadd.s32 %v1371, %v1302
        %v1384 = vadd.s32 %v1372, %v1302
        %v1385 = vadd.s32 %v1371, %v1303
        %v1386 = vadd.s32 %v1372, %v1303
        %v1387 = vadd.s32 %v1371, %v1304
        %v1388 = vadd.s32 %v1372, %v1304
        %v1389 = vadd.s32 %v1371, %v1305
        %v1390 = vadd.s32 %v1372, %v1305
        %v1391 = vsub.s32 %v1373, 1
        %v1392 = vsub.s32 %v1374, 1
        %v1393 = vsub.s32 %v1375, 1
        %v1394 = vsub.s32 %v1376, 1
        %v1395 = vsub.s32 %v1377, 1
        %v1396 = vsub.s32 %v1378, 1
        %v1397 = vsub.s32 %v1379, 1
        %v1398 = vsub.s32 %v1380, 1
        %v1399 = vsub.s32 %v1381, 1
        %v1400 = vsub.s32 %v1382, 1
        %v1401 = vsub.s32 %v1383, 1
        %v1402 = vsub.s32 %v1384, 1
        %v1403 = vsub.s32 %v1385, 1
        %v1404 = vsub.s32 %v1386, 1
        %v1405 = vsub.s32 %v1387, 1
        %v1406 = vsub.s32 %v1388, 1
        %v1407 = vsub.s32 %v1389, 1
        %v1408 = vsub.s32 %v1390, 1
        %s1409 = scalar_lea.vmem %s500, 1
        %v1410 = vld [vmem:[%s1409] ss:$2 sm:$0x3]
        %v1411 = vmul.u32 %v1410, 2
        %v1412 = vperm.slane %v1411, 0
        %v1413 = vperm.slane %v1411, 1
        %v1414 = vadd.s32 %v1412, %v1360
        %v1415 = vadd.s32 %v1413, %v1360
        %v1416 = vadd.s32 %v1412, %v1361
        %v1417 = vadd.s32 %v1413, %v1361
        %v1418 = vadd.s32 %v1412, %v1362
        %v1419 = vadd.s32 %v1413, %v1362
        %v1420 = vadd.s32 %v1412, %v1363
        %v1421 = vadd.s32 %v1413, %v1363
        %v1422 = vadd.s32 %v1412, %v1364
        %v1423 = vadd.s32 %v1413, %v1364
        %v1424 = vadd.s32 %v1412, %v1365
        %v1425 = vadd.s32 %v1413, %v1365
        %v1426 = vadd.s32 %v1412, %v1366
        %v1427 = vadd.s32 %v1413, %v1366
        %v1428 = vadd.s32 %v1412, %v1367
        %v1429 = vadd.s32 %v1413, %v1367
        %v1430 = vadd.s32 %v1412, %v1368
        %v1431 = vadd.s32 %v1413, %v1368
        %v1432 = vsub.s32 %v1414, 1
        %v1433 = vsub.s32 %v1415, 1
        %v1434 = vsub.s32 %v1416, 1
        %v1435 = vsub.s32 %v1417, 1
        %v1436 = vsub.s32 %v1418, 1
        %v1437 = vsub.s32 %v1419, 1
        %v1438 = vsub.s32 %v1420, 1
        %v1439 = vsub.s32 %v1421, 1
        %v1440 = vsub.s32 %v1422, 1
        %v1441 = vsub.s32 %v1423, 1
        %v1442 = vsub.s32 %v1424, 1
        %v1443 = vsub.s32 %v1425, 1
        %v1444 = vsub.s32 %v1426, 1
        %v1445 = vsub.s32 %v1427, 1
        %v1446 = vsub.s32 %v1428, 1
        %v1447 = vsub.s32 %v1429, 1
        %v1448 = vsub.s32 %v1430, 1
        %v1449 = vsub.s32 %v1431, 1
        %vm1450 = vcmp.ge.s32.totalorder %v1391, 0
        %vm1451 = vcmp.ge.s32.totalorder %v1392, 0
        %vm1452 = vcmp.ge.s32.totalorder %v1393, 0
        %vm1453 = vcmp.ge.s32.totalorder %v1394, 0
        %vm1454 = vcmp.ge.s32.totalorder %v1395, 0
        %vm1455 = vcmp.ge.s32.totalorder %v1396, 0
        %vm1456 = vcmp.ge.s32.totalorder %v1397, 0
        %vm1457 = vcmp.ge.s32.totalorder %v1398, 0
        %vm1458 = vcmp.ge.s32.totalorder %v1399, 0
        %vm1459 = vcmp.ge.s32.totalorder %v1400, 0
        %vm1460 = vcmp.ge.s32.totalorder %v1401, 0
        %vm1461 = vcmp.ge.s32.totalorder %v1402, 0
        %vm1462 = vcmp.ge.s32.totalorder %v1403, 0
        %vm1463 = vcmp.ge.s32.totalorder %v1404, 0
        %vm1464 = vcmp.ge.s32.totalorder %v1405, 0
        %vm1465 = vcmp.ge.s32.totalorder %v1406, 0
        %vm1466 = vcmp.ge.s32.totalorder %v1407, 0
        %vm1467 = vcmp.ge.s32.totalorder %v1408, 0
        %vm1468 = vcmp.lt.s32.totalorder %v1391, 32
        %vm1469 = vcmp.lt.s32.totalorder %v1392, 32
        %vm1470 = vcmp.lt.s32.totalorder %v1393, 32
        %vm1471 = vcmp.lt.s32.totalorder %v1394, 32
        %vm1472 = vcmp.lt.s32.totalorder %v1395, 32
        %vm1473 = vcmp.lt.s32.totalorder %v1396, 32
        %vm1474 = vcmp.lt.s32.totalorder %v1397, 32
        %vm1475 = vcmp.lt.s32.totalorder %v1398, 32
        %vm1476 = vcmp.lt.s32.totalorder %v1399, 32
        %vm1477 = vcmp.lt.s32.totalorder %v1400, 32
        %vm1478 = vcmp.lt.s32.totalorder %v1401, 32
        %vm1479 = vcmp.lt.s32.totalorder %v1402, 32
        %vm1480 = vcmp.lt.s32.totalorder %v1403, 32
        %vm1481 = vcmp.lt.s32.totalorder %v1404, 32
        %vm1482 = vcmp.lt.s32.totalorder %v1405, 32
        %vm1483 = vcmp.lt.s32.totalorder %v1406, 32
        %vm1484 = vcmp.lt.s32.totalorder %v1407, 32
        %vm1485 = vcmp.lt.s32.totalorder %v1408, 32
        %vm1486 = vmand %vm1450, %vm1468
        %vm1487 = vmand %vm1451, %vm1469
        %vm1488 = vmand %vm1452, %vm1470
        %vm1489 = vmand %vm1453, %vm1471
        %vm1490 = vmand %vm1454, %vm1472
        %vm1491 = vmand %vm1455, %vm1473
        %vm1492 = vmand %vm1456, %vm1474
        %vm1493 = vmand %vm1457, %vm1475
        %vm1494 = vmand %vm1458, %vm1476
        %vm1495 = vmand %vm1459, %vm1477
        %vm1496 = vmand %vm1460, %vm1478
        %vm1497 = vmand %vm1461, %vm1479
        %vm1498 = vmand %vm1462, %vm1480
        %vm1499 = vmand %vm1463, %vm1481
        %vm1500 = vmand %vm1464, %vm1482
        %vm1501 = vmand %vm1465, %vm1483
        %vm1502 = vmand %vm1466, %vm1484
        %vm1503 = vmand %vm1467, %vm1485
        %vm1504 = vcmp.ge.s32.totalorder %v1432, 0
        %vm1505 = vcmp.ge.s32.totalorder %v1433, 0
        %vm1506 = vcmp.ge.s32.totalorder %v1434, 0
        %vm1507 = vcmp.ge.s32.totalorder %v1435, 0
        %vm1508 = vcmp.ge.s32.totalorder %v1436, 0
        %vm1509 = vcmp.ge.s32.totalorder %v1437, 0
        %vm1510 = vcmp.ge.s32.totalorder %v1438, 0
        %vm1511 = vcmp.ge.s32.totalorder %v1439, 0
        %vm1512 = vcmp.ge.s32.totalorder %v1440, 0
        %vm1513 = vcmp.ge.s32.totalorder %v1441, 0
        %vm1514 = vcmp.ge.s32.totalorder %v1442, 0
        %vm1515 = vcmp.ge.s32.totalorder %v1443, 0
        %vm1516 = vcmp.ge.s32.totalorder %v1444, 0
        %vm1517 = vcmp.ge.s32.totalorder %v1445, 0
        %vm1518 = vcmp.ge.s32.totalorder %v1446, 0
        %vm1519 = vcmp.ge.s32.totalorder %v1447, 0
        %vm1520 = vcmp.ge.s32.totalorder %v1448, 0
        %vm1521 = vcmp.ge.s32.totalorder %v1449, 0
        %vm1522 = vmand %vm1486, %vm1504
        %vm1523 = vmand %vm1487, %vm1505
        %vm1524 = vmand %vm1488, %vm1506
        %vm1525 = vmand %vm1489, %vm1507
        %vm1526 = vmand %vm1490, %vm1508
        %vm1527 = vmand %vm1491, %vm1509
        %vm1528 = vmand %vm1492, %vm1510
        %vm1529 = vmand %vm1493, %vm1511
        %vm1530 = vmand %vm1494, %vm1512
        %vm1531 = vmand %vm1495, %vm1513
        %vm1532 = vmand %vm1496, %vm1514
        %vm1533 = vmand %vm1497, %vm1515
        %vm1534 = vmand %vm1498, %vm1516
        %vm1535 = vmand %vm1499, %vm1517
        %vm1536 = vmand %vm1500, %vm1518
        %vm1537 = vmand %vm1501, %vm1519
        %vm1538 = vmand %vm1502, %vm1520
        %vm1539 = vmand %vm1503, %vm1521
        %vm1540 = vcmp.lt.s32.totalorder %v1432, 32
        %vm1541 = vcmp.lt.s32.totalorder %v1433, 32
        %vm1542 = vcmp.lt.s32.totalorder %v1434, 32
        %vm1543 = vcmp.lt.s32.totalorder %v1435, 32
        %vm1544 = vcmp.lt.s32.totalorder %v1436, 32
        %vm1545 = vcmp.lt.s32.totalorder %v1437, 32
        %vm1546 = vcmp.lt.s32.totalorder %v1438, 32
        %vm1547 = vcmp.lt.s32.totalorder %v1439, 32
        %vm1548 = vcmp.lt.s32.totalorder %v1440, 32
        %vm1549 = vcmp.lt.s32.totalorder %v1441, 32
        %vm1550 = vcmp.lt.s32.totalorder %v1442, 32
        %vm1551 = vcmp.lt.s32.totalorder %v1443, 32
        %vm1552 = vcmp.lt.s32.totalorder %v1444, 32
        %vm1553 = vcmp.lt.s32.totalorder %v1445, 32
        %vm1554 = vcmp.lt.s32.totalorder %v1446, 32
        %vm1555 = vcmp.lt.s32.totalorder %v1447, 32
        %vm1556 = vcmp.lt.s32.totalorder %v1448, 32
        %vm1557 = vcmp.lt.s32.totalorder %v1449, 32
        %vm1558 = vmand %vm1522, %vm1540
        %vm1559 = vmand %vm1523, %vm1541
        %vm1560 = vmand %vm1524, %vm1542
        %vm1561 = vmand %vm1525, %vm1543
        %vm1562 = vmand %vm1526, %vm1544
        %vm1563 = vmand %vm1527, %vm1545
        %vm1564 = vmand %vm1528, %vm1546
        %vm1565 = vmand %vm1529, %vm1547
        %vm1566 = vmand %vm1530, %vm1548
        %vm1567 = vmand %vm1531, %vm1549
        %vm1568 = vmand %vm1532, %vm1550
        %vm1569 = vmand %vm1533, %vm1551
        %vm1570 = vmand %vm1534, %vm1552
        %vm1571 = vmand %vm1535, %vm1553
        %vm1572 = vmand %vm1536, %vm1554
        %vm1573 = vmand %vm1537, %vm1555
        %vm1574 = vmand %vm1538, %vm1556
        %vm1575 = vmand %vm1539, %vm1557
        %v1576 = vsel %vm1558, %v1233, 0.0
        %v1577 = vsel %vm1559, %v1234, 0.0
        %v1578 = vsel %vm1560, %v1235, 0.0
        %v1579 = vsel %vm1561, %v1236, 0.0
        %v1580 = vsel %vm1562, %v1237, 0.0
        %v1581 = vsel %vm1563, %v1238, 0.0
        %v1582 = vsel %vm1564, %v1239, 0.0
        %v1583 = vsel %vm1565, %v1240, 0.0
        %v1584 = vsel %vm1566, %v1241, 0.0
        %v1585 = vsel %vm1567, %v1242, 0.0
        %v1586 = vsel %vm1568, %v1243, 0.0
        %v1587 = vsel %vm1569, %v1244, 0.0
        %v1588 = vsel %vm1570, %v1245, 0.0
        %v1589 = vsel %vm1571, %v1246, 0.0
        %v1590 = vsel %vm1572, %v1247, 0.0
        %v1591 = vsel %vm1573, %v1248, 0.0
        %v1592 = vsel %vm1574, %v1249, 0.0
        %v1593 = vsel %vm1575, %v1250, 0.0
        %v1594 = vld [vmem:[%s4] sm:$0xf]
        %v1595 = vld [vmem:[%s4 + $0x4] sm:$0xf]
        %v1596 = vpack.c.bf16 %v1578, %v1576
        %v1597 = vpack.c.bf16 %v1579, %v1577
        %v1598 = vpack.c.bf16 %v1582, %v1580
        %v1599 = vpack.c.bf16 %v1583, %v1581
        %v1600 = vpack.c.bf16 %v1586, %v1584
        %v1601 = vpack.c.bf16 %v1587, %v1585
        %v1602 = vpack.c.bf16 %v1590, %v1588
        %v1603 = vpack.c.bf16 %v1591, %v1589
        %v1604 = vpack.c.bf16 %v1592, %v1592
        %v1605 = vpack.c.bf16 %v1593, %v1593
        %v1606 = vld [vmem:[%s5] sm:$0xff]
        %v1607 = vld [vmem:[%s5 + $0x8] sm:$0xff]
        %1609 = vset.pattern.permute.xlu0 0
        %1610 = vperm.xlu0 %1609, %v1606
        %v1611 = vpop.permute.xlu0 %1610
        %1614 = vset.pattern.permute.xlu0 0
        %1615 = vperm.xlu0 %1614, %v1607
        %v1616 = vpop.permute.xlu0 %1615
        %v1620 = vunpack.c.l.b16 %v1594
        %v1621 = vunpack.c.l.b16 %v1595
        %v1622 = vpack.c.b16 %v1621, %v1620
        %vm1623 = vcmask 588800
        %v1625 = vsel %vm1623, %v1622, 0
        %vm1627 = vcmask 1043456
        %v1629 = vsel %vm1627, %v1604, 0
        %v1632 = vsel %vm1627, %v1605, 0
        %1634 = vmatpush.bf16.msra.mxu0 0
        %1635 = vmatpush.bf16.msra.mxu0 0
        %1636 = vmatpush.bf16.msra.mxu0 0
        %1637 = vmatpush.bf16.msra.mxu0 %v1629
        %1638 = vmatpush.bf16.msra.mxu0 %v1602
        %1639 = vmatpush.bf16.msra.mxu0 %v1600
        %1640 = vmatpush.bf16.msra.mxu0 %v1598
        %1641 = vmatpush.bf16.msra.mxu0 %v1596
        %1642 = vmatmul.bf16.gmra.mxu0 %v1625
        %v1643 = vpop.f32.mrf.mxu0
        %v1644 = vadd.f32 %v1611, %v1643
        %v1645 = vpop.f32.mrf.mxu0
        %v1646 = vadd.f32 %v1616, %v1645
        %1647 = vdwg.mxu0
        %1648 = vmatpush.bf16.msra.mxu0 0
        %1649 = vmatpush.bf16.msra.mxu0 0
        %1650 = vmatpush.bf16.msra.mxu0 0
        %1651 = vmatpush.bf16.msra.mxu0 %v1632
        %1652 = vmatpush.bf16.msra.mxu0 %v1603
        %1653 = vmatpush.bf16.msra.mxu0 %v1601
        %1654 = vmatpush.bf16.msra.mxu0 %v1599
        %1655 = vmatpush.bf16.msra.mxu0 %v1597
        %1656 = vmatmul.bf16.gmra.mxu0 %v1625
        %v1657 = vpop.f32.mrf.mxu0
        %v1658 = vadd.f32 %v1611, %v1657
        %v1659 = vpop.f32.mrf.mxu0
        %v1660 = vadd.f32 %v1616, %v1659
        %1661 = vdwg.mxu0
        %v1662 = vxor.u32 %v1644, 2147483648
        %v1663 = vxor.u32 %v1658, 2147483648
        %v1664 = vxor.u32 %v1646, 2147483648
        %v1665 = vxor.u32 %v1660, 2147483648
        %v1666 = vmul.f32 %v1662, 1.442695
        %v1667 = vpow.pop %v1666
        %v1668 = vmul.f32 %v1663, 1.442695
        %v1669 = vpow.pop %v1668
        %v1670 = vmul.f32 %v1664, 1.442695
        %v1671 = vpow.pop %v1670
        %v1672 = vmul.f32 %v1665, 1.442695
        %v1673 = vpow.pop %v1672
        %v1674 = vadd.f32 %v1667, 1.0
        %v1675 = vadd.f32 %v1669, 1.0
        %v1676 = vadd.f32 %v1671, 1.0
        %v1677 = vadd.f32 %v1673, 1.0
        %v1678 = vrcp.pop %v1674
        %v1679 = vmul.f32 %v1674, %v1678
        %v1680 = vsub.f32 1.0, %v1679
        %v1681 = vmul.f32 %v1678, %v1680
        %v1682 = vadd.f32 %v1678, %v1681
        %vm1683 = vweird.f32 %v1674
        %vm1684 = vweird.f32 %v1678
        %vm1685 = vmor %vm1683, %vm1684
        %v1686 = vsel %vm1685, %v1678, %v1682
        %v1687 = vand.u32 2147483647, %v1674
        %vm1688 = vcmp.eq.f32.partialorder %v1687, 8.507059e+37
        %v1689 = vand.u32 %v1674, 2147483648
        %v1690 = vor.u32 1.1754944e-38, %v1689
        %v1691 = vsel %vm1688, %v1690, %v1686
        %v1692 = vmul.f32 1.0, %v1691
        %v1693 = vrcp.pop %v1675
        %v1694 = vmul.f32 %v1675, %v1693
        %v1695 = vsub.f32 1.0, %v1694
        %v1696 = vmul.f32 %v1693, %v1695
        %v1697 = vadd.f32 %v1693, %v1696
        %vm1698 = vweird.f32 %v1675
        %vm1699 = vweird.f32 %v1693
        %vm1700 = vmor %vm1698, %vm1699
        %v1701 = vsel %vm1700, %v1693, %v1697
        %v1702 = vand.u32 2147483647, %v1675
        %vm1703 = vcmp.eq.f32.partialorder %v1702, 8.507059e+37
        %v1704 = vand.u32 %v1675, 2147483648
        %v1705 = vor.u32 1.1754944e-38, %v1704
        %v1706 = vsel %vm1703, %v1705, %v1701
        %v1707 = vmul.f32 1.0, %v1706
        %v1708 = vrcp.pop %v1676
        %v1709 = vmul.f32 %v1676, %v1708
        %v1710 = vsub.f32 1.0, %v1709
        %v1711 = vmul.f32 %v1708, %v1710
        %v1712 = vadd.f32 %v1708, %v1711
        %vm1713 = vweird.f32 %v1676
        %vm1714 = vweird.f32 %v1708
        %vm1715 = vmor %vm1713, %vm1714
        %v1716 = vsel %vm1715, %v1708, %v1712
        %v1717 = vand.u32 2147483647, %v1676
        %vm1718 = vcmp.eq.f32.partialorder %v1717, 8.507059e+37
        %v1719 = vand.u32 %v1676, 2147483648
        %v1720 = vor.u32 1.1754944e-38, %v1719
        %v1721 = vsel %vm1718, %v1720, %v1716
        %v1722 = vmul.f32 1.0, %v1721
        %v1723 = vrcp.pop %v1677
        %v1724 = vmul.f32 %v1677, %v1723
        %v1725 = vsub.f32 1.0, %v1724
        %v1726 = vmul.f32 %v1723, %v1725
        %v1727 = vadd.f32 %v1723, %v1726
        %vm1728 = vweird.f32 %v1677
        %vm1729 = vweird.f32 %v1723
        %vm1730 = vmor %vm1728, %vm1729
        %v1731 = vsel %vm1730, %v1723, %v1727
        %v1732 = vand.u32 2147483647, %v1677
        %vm1733 = vcmp.eq.f32.partialorder %v1732, 8.507059e+37
        %v1734 = vand.u32 %v1677, 2147483648
        %v1735 = vor.u32 1.1754944e-38, %v1734
        %v1736 = vsel %vm1733, %v1735, %v1731
        %v1737 = vmul.f32 1.0, %v1736
        %v1738 = vmul.f32 %v1644, %v1692
        %v1739 = vmul.f32 %v1658, %v1707
        %v1740 = vmul.f32 %v1646, %v1722
        %v1741 = vmul.f32 %v1660, %v1737
        %v1742 = vld [vmem:[%s6] sm:$0xf]
        %v1743 = vld [vmem:[%s6 + $0x4] sm:$0x3]
        %v1744 = vpack.c.bf16 %v1740, %v1738
        %v1745 = vpack.c.bf16 %v1741, %v1739
        %v1746 = vld [vmem:[%s7] sm:$0xff]
        %v1747 = vld [vmem:[%s7 + $0x8] sm:$0xf]
        %1749 = vset.pattern.permute.xlu0 0
        %1750 = vperm.xlu0 %1749, %v1746
        %v1751 = vpop.permute.xlu0 %1750
        %1754 = vset.pattern.permute.xlu0 0
        %1755 = vperm.xlu0 %1754, %v1747
        %v1756 = vpop.permute.xlu0 %1755
        %v1760 = vunpack.c.l.b16 %v1742
        %v1761 = vunpack.c.l.b16 %v1743
        %v1762 = vpack.c.b16 %v1761, %v1760
        %vm1763 = vcmask 130048
        %v1765 = vsel %vm1763, %v1762, 0
        %1767 = vmatpush.bf16.msra.mxu0 0
        %1768 = vmatpush.bf16.msra.mxu0 0
        %1769 = vmatpush.bf16.msra.mxu0 0
        %1770 = vmatpush.bf16.msra.mxu0 0
        %1771 = vmatpush.bf16.msra.mxu0 0
        %1772 = vmatpush.bf16.msra.mxu0 0
        %1773 = vmatpush.bf16.msra.mxu0 0
        %1774 = vmatpush.bf16.msra.mxu0 %v1744
        %1775 = vmatmul.bf16.gmra.mxu0 %v1765
        %v1776 = vpop.f32.mrf.mxu0
        %v1777 = vadd.f32 %v1751, %v1776
        %v1778 = vpop.f32.mrf.mxu0
        %v1779 = vadd.f32 %v1756, %v1778
        %1780 = vdwg.mxu0
        %1781 = vmatpush.bf16.msra.mxu0 0
        %1782 = vmatpush.bf16.msra.mxu0 0
        %1783 = vmatpush.bf16.msra.mxu0 0
        %1784 = vmatpush.bf16.msra.mxu0 0
        %1785 = vmatpush.bf16.msra.mxu0 0
        %1786 = vmatpush.bf16.msra.mxu0 0
        %1787 = vmatpush.bf16.msra.mxu0 0
        %1788 = vmatpush.bf16.msra.mxu0 %v1745
        %1789 = vmatmul.bf16.gmra.mxu0 %v1765
        %v1790 = vpop.f32.mrf.mxu0
        %v1791 = vadd.f32 %v1751, %v1790
        %v1792 = vpop.f32.mrf.mxu0
        %v1793 = vadd.f32 %v1756, %v1792
        %1794 = vdwg.mxu0
        %v1795 = vmul.f32 %v1777, 0.5
        %v1796 = vmul.f32 %v1791, 0.5
        %v1799 = vrot.slane %v1795, 2
        %v1800 = vrot.slane %v1796, 2
        %v1803 = vsub.f32 %v1777, %v1799
        %v1804 = vsub.f32 %v1791, %v1800
        %v1805 = vadd.f32 %v1777, %v1799
        %v1806 = vadd.f32 %v1791, %v1800
        %v1809 = vrot.slane %v1805, 6
        %v1810 = vrot.slane %v1806, 6
        %v1813 = vsel %vm750, %v1803, %v1809
        %v1814 = vsel %vm750, %v1804, %v1810
        %v1817 = vrot.slane %v1814, 4
        %v1818 = vsel %vm1627, %v1813, %v1817
        %1820 = vst [vmem:[%s482] sm:$0xff] %v1818
        %vm1821 = vcmp.ge.s32.totalorder %v1252, 4
        %vm1822 = vcmp.ge.s32.totalorder %v1253, 4
        %vm1823 = vcmp.lt.s32.totalorder %v1252, 12
        %vm1824 = vcmp.lt.s32.totalorder %v1253, 12
        %vm1825 = vmand %vm1821, %vm1823
        %vm1826 = vmand %vm1822, %vm1824
        %v1827 = vsel %vm1825, %v1777, -1e+30
        %v1828 = vsel %vm1825, %v1791, -1e+30
        %v1829 = vsel %vm1826, %v1779, -1e+30
        %v1830 = vsel %vm1826, %v1793, -1e+30
        %v1831 = vsel %vm1627, %v1829, -inf
        %v1832 = vmax.f32 %v1827, %v1831
        %v1833 = vrot.slane %v1832, 4
        %v1834 = vmax.f32 %v1832, %v1833
        %v1835 = vrot.slane %v1834, 2
        %v1836 = vmax.f32 %v1834, %v1835
        %v1837 = vrot.slane %v1836, 1
        %v1838 = vmax.f32 %v1836, %v1837
        %v1839 = vsel %vm1627, %v1830, -inf
        %v1840 = vmax.f32 %v1828, %v1839
        %v1841 = vrot.slane %v1840, 4
        %v1842 = vmax.f32 %v1840, %v1841
        %v1843 = vrot.slane %v1842, 2
        %v1844 = vmax.f32 %v1842, %v1843
        %v1845 = vrot.slane %v1844, 1
        %v1846 = vmax.f32 %v1844, %v1845
        %v1849 = vrot.slane %v1846, 7
        %v1850 = vsel %vm749, %v1838, %v1849
        %v1852 = vlaneseq
        %vm1853 = vcmp.ge.s32.totalorder %v1852, 0
        %vm1854 = vcmp.lt.s32.totalorder %v1852, 256
        %vm1855 = vmand %vm1853, %vm1854
        %1856 = vst.msk [vmem:[%s506] sm:$0x3] %vm1855, %v1850
        %vm1857 = vcmp.eq.f32.partialorder %v1827, %v1838
        %vm1858 = vcmp.eq.f32.partialorder %v1828, %v1846
        %vm1859 = vcmp.eq.f32.partialorder %v1829, %v1838
        %vm1860 = vcmp.eq.f32.partialorder %v1830, %v1846
        %v1861 = vsub.s32 %v1252, 4
        %v1862 = vsub.s32 %v1253, 4
        %v1863 = vcvt.s32.f32 %v1861
        %v1864 = vcvt.s32.f32 %v1862
        %v1865 = vsel %vm1857, %v1863, 1e+09
        %v1866 = vsel %vm1858, %v1863, 1e+09
        %v1867 = vsel %vm1859, %v1864, 1e+09
        %v1868 = vsel %vm1860, %v1864, 1e+09
        %v1869 = vsel %vm1627, %v1867, inf
        %v1870 = vmin.f32 %v1865, %v1869
        %v1871 = vrot.slane %v1870, 4
        %v1872 = vmin.f32 %v1870, %v1871
        %v1873 = vrot.slane %v1872, 2
        %v1874 = vmin.f32 %v1872, %v1873
        %v1875 = vrot.slane %v1874, 1
        %v1876 = vmin.f32 %v1874, %v1875
        %v1877 = vsel %vm1627, %v1868, inf
        %v1878 = vmin.f32 %v1866, %v1877
        %v1879 = vrot.slane %v1878, 4
        %v1880 = vmin.f32 %v1878, %v1879
        %v1881 = vrot.slane %v1880, 2
        %v1882 = vmin.f32 %v1880, %v1881
        %v1883 = vrot.slane %v1882, 1
        %v1884 = vmin.f32 %v1882, %v1883
        %v1885 = vcvt.f32.s32.to.zero.pseudo %v1876
        %v1886 = vcvt.f32.s32.to.zero.pseudo %v1884
        %v1887 = vrot.slane %v1886, 7
        %v1888 = vsel %vm749, %v1885, %v1887
        %1889 = vst.msk [vmem:[%s511] sm:$0x3] %vm1855, %v1888
        %s1890 = sand.u32 %s211, 1
        %s1891 = scalar_lea.sflag [#allocation4], %s1890
        %s1892 = sand.u32 %s211, 1
        %s1893 = smul.addr %s1892, 8
        %s1894 = scalar_lea.vmem [#allocation3], %s1893
        %s1895 = smul.u32 2, %s25
        %p1896 = scmp.lt.s32.totalorder %s1895, 3
        %s1897 = scalar_select %p1896, %s1895, 3
        %s1898 = scalar_lea.vmem %s9, %s1897
        %s1899 = smul.u32 2, %s25
        %p1900 = scmp.lt.s32.totalorder %s1899, 3
        %s1901 = scalar_select %p1900, %s1899, 3
        %s1902 = scalar_lea.vmem %s10, %s1901
        // Predicated region
        $region91: #{yolov8_detector_forward.1} parent=85 // pred_check
          %p1903 = pneg %p221
        $region92: #{yolov8_detector_forward.1} parent=85 // pred_check_branch
          %1905 = sbr.rel (%p1903) target = $region94
        $region93: #{yolov8_detector_forward.1} parent=85 // pred_region
          %s1906 = smul.u32 2, %s25
          %1908 = vsyncadd %s1891, 0
          %s1909 = smul.addr %s1906, 4
          %s1910 = scalar_lea.hbm %s8, %s1909
          %s1912 = sshll.u32 %s1894, 4
          %s1913 = int_to_ptr.vmem [resolvable:$true] %s1912
          %s1914 = sshll.u32 %s1910, 4
          %s1915 = int_to_ptr.hbm [resolvable:$true] %s1914
          %1917 = dma.vmem_to_hbm [thread:$0]  %s1913, 128, %s1915, %s1891
        $region94: #{yolov8_detector_forward.1} parent=85 // pred_fallthru
          _
        // Predicated region
        $region95: #{yolov8_detector_forward.1} parent=85 // pred_check
          %p1918 = pneg %p247
        $region96: #{yolov8_detector_forward.1} parent=85 // pred_check_branch
          %1920 = sbr.rel (%p1918) target = $region98
        $region97: #{yolov8_detector_forward.1} parent=85 // pred_region
          %s1921 = smul.u32 2, %s25
        $region98: #{yolov8_detector_forward.1} parent=85 // pred_fallthru
          _
        // Predicated region
        $region99: #{yolov8_detector_forward.1} parent=85 // pred_check
          %p1922 = pneg %p273
        $region100: #{yolov8_detector_forward.1} parent=85 // pred_check_branch
          %1924 = sbr.rel (%p1922) target = $region102
        $region101: #{yolov8_detector_forward.1} parent=85 // pred_region
          %s1925 = smul.u32 2, %s25
        $region102: #{yolov8_detector_forward.1} parent=85 // pred_fallthru
          _
      $region86: #{yolov8_detector_forward.1} parent=5 // pred_fallthru
        _
      %p1926 = scmp.le.s32.totalorder 2, %s20
      // Predicated region
      $region103: #{yolov8_detector_forward.1} parent=5 // pred_check
        %p1927 = pneg %p1926
      $region104: #{yolov8_detector_forward.1} parent=5 // pred_check_branch
        %1929 = sbr.rel (%p1927) target = $region106
      $region105: #{yolov8_detector_forward.1} parent=5 // pred_region
        %s1930 = ssub.s32 %s20, 2
        // Predicated region
        $region107: #{yolov8_detector_forward.1} parent=105 // pred_check
          %p1931 = pneg %p227
        $region108: #{yolov8_detector_forward.1} parent=105 // pred_check_branch
          %1933 = sbr.rel (%p1931) target = $region110
        $region109: #{yolov8_detector_forward.1} parent=105 // pred_region
          %s1934 = sand.u32 %s212, 1
          %s1935 = scalar_lea.sflag [#allocation4], %s1934
          %s1936 = sand.u32 %s212, 1
          %s1937 = smul.addr %s1936, 8
          %s1938 = scalar_lea.vmem [#allocation3], %s1937
          %1940 = dma.done %s1935, 128
        $region110: #{yolov8_detector_forward.1} parent=105 // pred_fallthru
          _
        // Predicated region
        $region111: #{yolov8_detector_forward.1} parent=105 // pred_check
          %p1941 = pneg %p253
        $region112: #{yolov8_detector_forward.1} parent=105 // pred_check_branch
          %1943 = sbr.rel (%p1941) target = $region114
        $region113: #{yolov8_detector_forward.1} parent=105 // pred_region
          %s1944 = smul.u32 2, %s26
          %p1945 = scmp.lt.s32.totalorder %s1944, 3
          %s1946 = scalar_select %p1945, %s1944, 3
          %s1947 = scalar_lea.vmem %s9, %s1946
        $region114: #{yolov8_detector_forward.1} parent=105 // pred_fallthru
          _
        // Predicated region
        $region115: #{yolov8_detector_forward.1} parent=105 // pred_check
          %p1948 = pneg %p279
        $region116: #{yolov8_detector_forward.1} parent=105 // pred_check_branch
          %1950 = sbr.rel (%p1948) target = $region118
        $region117: #{yolov8_detector_forward.1} parent=105 // pred_region
          %s1951 = smul.u32 2, %s26
          %p1952 = scmp.lt.s32.totalorder %s1951, 3
          %s1953 = scalar_select %p1952, %s1951, 3
          %s1954 = scalar_lea.vmem %s10, %s1953
        $region118: #{yolov8_detector_forward.1} parent=105 // pred_fallthru
          _
      $region106: #{yolov8_detector_forward.1} parent=5 // pred_fallthru
        _
    $region6: #{yolov8_detector_forward.1} parent=1 // loop_footer
      %s24 = sadd.s32 1, %s20
    $region7: #{yolov8_detector_forward.1} parent=1 // loop_footer_branch
      %19 = sbr.rel target = $region3
    $region8: #{yolov8_detector_forward.1} parent=1 // loop_exit
      _
    %1955 = vsyncpa [#allocation4], 1
    %s1956 = scalar_lea.sflag [#allocation4], 1
    %1957 = vsyncpa %s1956, 1

</llo_original>
